<compile_context>
chip_gen: v7x
topology: tpu7x:2x2x1
jax: 0.10.0
libtpu: 0.0.40
codegen_flags: <defaults>
</compile_context>

<pallas_src>
import math
import functools

import jax
import jax.numpy as jnp
from jax import lax
from jax.experimental import pallas as pl
from jax.experimental.pallas import tpu as pltpu


# ------------------------------ fused kernel ------------------------------

def _decoder_layer_kernel(tgt_ref, mem_ref,
                          wq_ref, bq_ref, wk_ref, bk_ref, wv_ref, bv_ref,
                          wo_ref, bo_ref,
                          g2_ref, be2_ref,
                          w1_ref, b1_ref, w2_ref, b2_ref,
                          g3_ref, be3_ref,
                          o_ref,
                          o_cat_ref,
                          *, num_heads, b_blk, t_len, s_len, eps):
    d = wq_ref.shape[0]
    hd = d // num_heads
    scale = 1.0 / math.sqrt(hd)

    # Activation slab for this grid step: (B_blk*T, D) / (B_blk*S, D).
    x_t = tgt_ref[...].astype(jnp.float32)            # residual path stays f32
    x_m = mem_ref[...].astype(jnp.float32)
    x_t_bf = x_t.astype(jnp.bfloat16)
    x_m_bf = x_m.astype(jnp.bfloat16)

    # ----- projections: big-M matmuls, bf16 operands, f32 accumulation -----
    q = jnp.dot(x_t_bf, wq_ref[...], preferred_element_type=jnp.float32) + bq_ref[...]
    k = jnp.dot(x_m_bf, wk_ref[...], preferred_element_type=jnp.float32) + bk_ref[...]
    v = jnp.dot(x_m_bf, wv_ref[...], preferred_element_type=jnp.float32) + bv_ref[...]

    # Per-batch view for attention (batch elements only attend to their own memory).
    q3 = q.reshape(b_blk, t_len, d)
    k3 = k.reshape(b_blk, s_len, d)
    v3 = v.reshape(b_blk, s_len, d)

    # ----- per-head attention, outputs written into a VMEM scratch ---------
    # Static unroll (small num_heads here).  At production head counts,
    # restructure so heads live on a grid axis / fori_loop instead.
    for h in range(num_heads):
        lo = h * hd
        hi = lo + hd
        qh = q3[:, :, lo:hi].astype(jnp.bfloat16)      # (B_blk, T, hd)
        kh = k3[:, :, lo:hi].astype(jnp.bfloat16)      # (B_blk, S, hd)
        vh = v3[:, :, lo:hi].astype(jnp.bfloat16)      # (B_blk, S, hd)
        sc = jnp.einsum("btd,bsd->bts", qh, kh,
                        preferred_element_type=jnp.float32) * scale
        sc = sc - jnp.max(sc, axis=-1, keepdims=True)
        p = jnp.exp(sc)
        p = p * pl.reciprocal(jnp.sum(p, axis=-1, keepdims=True), approx=False)
        oh = jnp.einsum("bts,bsd->btd", p.astype(jnp.bfloat16), vh,
                        preferred_element_type=jnp.float32)    # (B_blk, T, hd)
        o_cat_ref[:, :, lo:hi] = oh                    # concat-by-store (head order)

    # ----- single K=D output projection (replaces num_heads K=hd matmuls) --
    o_cat = o_cat_ref[...].reshape(b_blk * t_len, d).astype(jnp.bfloat16)
    h_attn = jnp.dot(o_cat, wo_ref[...],
                     preferred_element_type=jnp.float32) + bo_ref[...]
    # dropout2 identity (inference)

    def layer_norm(y, g, b):                           # f32 statistics
        mean = jnp.mean(y, axis=-1, keepdims=True)
        var = jnp.mean(jnp.square(y - mean), axis=-1, keepdims=True)
        return (y - mean) * lax.rsqrt(var + eps) * g + b

    # residual + norm2
    x = layer_norm(x_t + h_attn, g2_ref[...], be2_ref[...])

    # ----- feed forward: Linear1 -> ReLU -> Linear2 (dropouts identity) ----
    ff = jnp.dot(x.astype(jnp.bfloat16), w1_ref[...],
                 preferred_element_type=jnp.float32) + b1_ref[...]
    ff = jnp.maximum(ff, 0.0)
    ff = jnp.dot(ff.astype(jnp.bfloat16), w2_ref[...],
                 preferred_element_type=jnp.float32) + b2_ref[...]

    # residual + norm3
    out = layer_norm(x + ff, g3_ref[...], be3_ref[...])
    o_ref[...] = out.astype(o_ref.dtype)


# -------------------------------- wrapper ---------------------------------

_HAS_BUFFERED = hasattr(pl, "Buffered")


def _param_spec(shape):
    """Full-array block with a constant index map; single-buffered if supported."""
    idx = lambda i: (0,) * len(shape)
    if _HAS_BUFFERED:
        try:
            return pl.BlockSpec(shape, idx, pipeline_mode=pl.Buffered(1))
        except TypeError:
            pass
    return pl.BlockSpec(shape, idx)


def _choose_batch_block(b, t, s, target_rows=512):
    """Largest batch slab that keeps row counts near target_rows and divides b."""
    if b * max(t, s) <= target_rows:
        return b                               # block == full dims: always legal
    for cand in range(b - 1, 0, -1):
        if b % cand:
            continue
        if (cand * t) % 8 or (cand * s) % 8:   # keep blocks sublane-aligned
            continue
        if cand * max(t, s) <= target_rows:
            return cand
    return b


def _vmem_limit_bytes(b_blk, t, s, d, dff):
    w_bytes = 2 * (4 * d * d + 2 * d * dff)                 # bf16 weights resident
    act_bytes = 4 * b_blk * max(t, s) * max(d, dff) * 8     # generous f32 temporaries
    est = 2 * w_bytes + 2 * act_bytes + (4 << 20)
    # Clamp: <= 56 MiB leaves headroom on v7x (64 MiB physical VMEM).
    return int(min(max(est, 16 << 20), 56 << 20))


def prepare_params(params):
    """One-time parameter prep (outside the jitted forward): cast MXU weights to bf16."""
    p = dict(params)
    for name in ("wq", "wk", "wv", "wo", "w1", "w2"):
        p[name] = params[name].astype(jnp.bfloat16)
    return p


def rel_transformer_decoder_layer(tgt, memory, params, num_heads):
    b, t, d = tgt.shape
    s = memory.shape[1]
    dff = params["w1"].shape[1]

    b_blk = _choose_batch_block(b, t, s)
    n_blocks = b // b_blk

    # Flatten batch*seq so in-kernel matmuls see a filled M dimension.
    tgt2 = tgt.reshape(b * t, d)
    mem2 = memory.reshape(b * s, d)

    kernel = functools.partial(_decoder_layer_kernel, num_heads=num_heads,
                               b_blk=b_blk, t_len=t, s_len=s, eps=1e-5)

    out2 = pl.pallas_call(
        kernel,
        out_shape=jax.ShapeDtypeStruct((b * t, d), tgt.dtype),
        grid=(n_blocks,),
        in_specs=[
            pl.BlockSpec((b_blk * t, d), lambda i: (i, 0)),    # tgt slab
            pl.BlockSpec((b_blk * s, d), lambda i: (i, 0)),    # memory slab
            _param_spec(params["wq"].shape), _param_spec(params["bq"].shape),
            _param_spec(params["wk"].shape), _param_spec(params["bk"].shape),
            _param_spec(params["wv"].shape), _param_spec(params["bv"].shape),
            _param_spec(params["wo"].shape), _param_spec(params["bo"].shape),
            _param_spec(params["g2"].shape), _param_spec(params["be2"].shape),
            _param_spec(params["w1"].shape), _param_spec(params["b1"].shape),
            _param_spec(params["w2"].shape), _param_spec(params["b2"].shape),
            _param_spec(params["g3"].shape), _param_spec(params["be3"].shape),
        ],
        out_specs=pl.BlockSpec((b_blk * t, d), lambda i: (i, 0)),
        scratch_shapes=[pltpu.VMEM((b_blk, t, d), jnp.float32)],   # per-head concat
        compiler_params=pltpu.CompilerParams(
            dimension_semantics=("parallel",),
            vmem_limit_bytes=_vmem_limit_bytes(b_blk, t, s, d, dff)),
    )(tgt2, mem2,
      params["wq"], params["bq"], params["wk"], params["bk"],
      params["wv"], params["bv"], params["wo"], params["bo"],
      params["g2"], params["be2"],
      params["w1"], params["b1"], params["w2"], params["b2"],
      params["g3"], params["be3"])

    return out2.reshape(b, t, d)


# --------------------------- pure-JAX reference ----------------------------

def reference_layer(tgt, memory, params, num_heads, eps=1e-5):
    b, t, d = tgt.shape
    hd = d // num_heads
    q = tgt @ params["wq"] + params["bq"]
    k = memory @ params["wk"] + params["bk"]
    v = memory @ params["wv"] + params["bv"]

    def split(x):
        return x.reshape(b, -1, num_heads, hd).transpose(0, 2, 1, 3)   # (b,h,L,hd)

    qh, kh, vh = split(q), split(k), split(v)
    scores = jnp.einsum("bhtd,bhsd->bhts", qh / math.sqrt(hd), kh)
    p = jax.nn.softmax(scores, axis=-1)
    o = jnp.einsum("bhts,bhsd->bhtd", p, vh).transpose(0, 2, 1, 3).reshape(b, t, d)
    h = o @ params["wo"] + params["bo"]

    def ln(x, g, be):
        m = x.mean(-1, keepdims=True)
        var = ((x - m) ** 2).mean(-1, keepdims=True)
        return (x - m) / jnp.sqrt(var + eps) * g + be

    x = ln(tgt + h, params["g2"], params["be2"])
    ff = jnp.maximum(x @ params["w1"] + params["b1"], 0.0) @ params["w2"] + params["b2"]
    return ln(x + ff, params["g3"], params["be3"])


# --------------------------------- driver ---------------------------------

def init_params(key, d_model, dim_feedforward):
    ks = jax.random.split(key, 6)

    def w(k, shape):
        return jax.random.normal(k, shape, dtype=jnp.float32) * 0.05

    return {
        "wq": w(ks[0], (d_model, d_model)), "bq": jnp.zeros((1, d_model), jnp.float32),
        "wk": w(ks[1], (d_model, d_model)), "bk": jnp.zeros((1, d_model), jnp.float32),
        "wv": w(ks[2], (d_model, d_model)), "bv": jnp.zeros((1, d_model), jnp.float32),
        "wo": w(ks[3], (d_model, d_model)), "bo": jnp.zeros((1, d_model), jnp.float32),
        "w1": w(ks[4], (d_model, dim_feedforward)), "b1": jnp.zeros((1, dim_feedforward), jnp.float32),
        "w2": w(ks[5], (dim_feedforward, d_model)), "b2": jnp.zeros((1, d_model), jnp.float32),
        "g2": jnp.ones((1, d_model), jnp.float32), "be2": jnp.zeros((1, d_model), jnp.float32),
        "g3": jnp.ones((1, d_model), jnp.float32), "be3": jnp.zeros((1, d_model), jnp.float32),
    }


if __name__ == "__main__":
    d_model = 32
    nhead = 4
    dim_feedforward = 64
    batch = 2
    tgt_len = 8
    mem_len = 8

    key = jax.random.PRNGKey(0)
    k_tgt, k_mem, k_par = jax.random.split(key, 3)
    tgt = jax.random.normal(k_tgt, (batch, tgt_len, d_model), dtype=jnp.float32)
    memory = jax.random.normal(k_mem, (batch, mem_len, d_model), dtype=jnp.float32)
    params = init_params(k_par, d_model, dim_feedforward)

    kernel_params = prepare_params(params)      # bf16 weight cast done ONCE, outside jit
    fwd = jax.jit(functools.partial(rel_transformer_decoder_layer, num_heads=nhead))
    out = fwd(tgt, memory, kernel_params)
    jax.block_until_ready(out)

    assert out.shape == (batch, tgt_len, d_model)
    assert bool(jnp.all(jnp.isfinite(out)))

    ref = reference_layer(tgt, memory, params, nhead)   # f32 reference
    max_err = float(jnp.max(jnp.abs(out - ref)))
    # bf16 matmul operands introduce ~0.4% relative rounding vs the f32 reference.
    assert max_err < 5e-2, f"mismatch vs reference: {max_err}"

    print("KERNEL_OK")
</pallas_src>

<mosaic_0001>
module attributes {stable_mosaic.version = 11 : i64} {
  func.func @_decoder_layer_kernel(%arg0: i32, %arg1: memref<16x32xf32, #tpu.memory_space<vmem>>, %arg2: memref<16x32xf32, #tpu.memory_space<vmem>>, %arg3: memref<32x32xbf16, #tpu.memory_space<vmem>>, %arg4: memref<1x32xf32, #tpu.memory_space<vmem>>, %arg5: memref<32x32xbf16, #tpu.memory_space<vmem>>, %arg6: memref<1x32xf32, #tpu.memory_space<vmem>>, %arg7: memref<32x32xbf16, #tpu.memory_space<vmem>>, %arg8: memref<1x32xf32, #tpu.memory_space<vmem>>, %arg9: memref<32x32xbf16, #tpu.memory_space<vmem>>, %arg10: memref<1x32xf32, #tpu.memory_space<vmem>>, %arg11: memref<1x32xf32, #tpu.memory_space<vmem>>, %arg12: memref<1x32xf32, #tpu.memory_space<vmem>>, %arg13: memref<32x64xbf16, #tpu.memory_space<vmem>>, %arg14: memref<1x64xf32, #tpu.memory_space<vmem>>, %arg15: memref<64x32xbf16, #tpu.memory_space<vmem>>, %arg16: memref<1x32xf32, #tpu.memory_space<vmem>>, %arg17: memref<1x32xf32, #tpu.memory_space<vmem>>, %arg18: memref<1x32xf32, #tpu.memory_space<vmem>>, %arg19: memref<16x32xf32, #tpu.memory_space<vmem>>, %arg20: memref<2x8x32xf32, #tpu.memory_space<vmem>>) attributes {dimension_semantics = [#tpu.dimension_semantics<parallel>], iteration_bounds = array<i64: 1>, scalar_prefetch = 0 : i64, scratch_operands = 1 : i64, tpu.core_type = #tpu.core_type<tc>, window_params = [{transform_indices = @transform_0, window_bounds = array<i64: 16, 32>}, {transform_indices = @transform_1, window_bounds = array<i64: 16, 32>}, {pipeline_mode = #tpu.pipeline_mode<synchronous>, transform_indices = @transform_2, window_bounds = array<i64: 32, 32>}, {pipeline_mode = #tpu.pipeline_mode<synchronous>, transform_indices = @transform_3, window_bounds = array<i64: 1, 32>}, {pipeline_mode = #tpu.pipeline_mode<synchronous>, transform_indices = @transform_4, window_bounds = array<i64: 32, 32>}, {pipeline_mode = #tpu.pipeline_mode<synchronous>, transform_indices = @transform_5, window_bounds = array<i64: 1, 32>}, {pipeline_mode = #tpu.pipeline_mode<synchronous>, transform_indices = @transform_6, window_bounds = array<i64: 32, 32>}, {pipeline_mode = #tpu.pipeline_mode<synchronous>, transform_indices = @transform_7, window_bounds = array<i64: 1, 32>}, {pipeline_mode = #tpu.pipeline_mode<synchronous>, transform_indices = @transform_8, window_bounds = array<i64: 32, 32>}, {pipeline_mode = #tpu.pipeline_mode<synchronous>, transform_indices = @transform_9, window_bounds = array<i64: 1, 32>}, {pipeline_mode = #tpu.pipeline_mode<synchronous>, transform_indices = @transform_10, window_bounds = array<i64: 1, 32>}, {pipeline_mode = #tpu.pipeline_mode<synchronous>, transform_indices = @transform_11, window_bounds = array<i64: 1, 32>}, {pipeline_mode = #tpu.pipeline_mode<synchronous>, transform_indices = @transform_12, window_bounds = array<i64: 32, 64>}, {pipeline_mode = #tpu.pipeline_mode<synchronous>, transform_indices = @transform_13, window_bounds = array<i64: 1, 64>}, {pipeline_mode = #tpu.pipeline_mode<synchronous>, transform_indices = @transform_14, window_bounds = array<i64: 64, 32>}, {pipeline_mode = #tpu.pipeline_mode<synchronous>, transform_indices = @transform_15, window_bounds = array<i64: 1, 32>}, {pipeline_mode = #tpu.pipeline_mode<synchronous>, transform_indices = @transform_16, window_bounds = array<i64: 1, 32>}, {pipeline_mode = #tpu.pipeline_mode<synchronous>, transform_indices = @transform_17, window_bounds = array<i64: 1, 32>}, {transform_indices = @transform_18, window_bounds = array<i64: 16, 32>}]} {
    %c0 = arith.constant 0 : index
    %c0_0 = arith.constant 0 : index
    %0 = vector.load %arg1[%c0, %c0_0] : memref<16x32xf32, #tpu.memory_space<vmem>>, vector<16x32xf32>
    %c0_1 = arith.constant 0 : index
    %c0_2 = arith.constant 0 : index
    %1 = vector.load %arg2[%c0_1, %c0_2] : memref<16x32xf32, #tpu.memory_space<vmem>>, vector<16x32xf32>
    %2 = arith.truncf %0 : vector<16x32xf32> to vector<16x32xbf16>
    %3 = arith.truncf %1 : vector<16x32xf32> to vector<16x32xbf16>
    %c0_3 = arith.constant 0 : index
    %c0_4 = arith.constant 0 : index
    %4 = vector.load %arg3[%c0_3, %c0_4] : memref<32x32xbf16, #tpu.memory_space<vmem>>, vector<32x32xbf16>
    %cst = arith.constant dense<0.000000e+00> : vector<16x32xf32>
    %5 = tpu.matmul %2, %4, %cst {dimension_numbers = #tpu.dot_dimension_numbers<[1], [0], [0], [1], [0, 0, 1, 1], [], []>} : vector<16x32xbf16>, vector<32x32xbf16>, vector<16x32xf32> -> vector<16x32xf32>
    %c0_5 = arith.constant 0 : index
    %c0_6 = arith.constant 0 : index
    %6 = vector.load %arg4[%c0_5, %c0_6] : memref<1x32xf32, #tpu.memory_space<vmem>>, vector<1x32xf32>
    %7 = vector.broadcast %6 : vector<1x32xf32> to vector<16x32xf32>
    %8 = arith.addf %5, %7 : vector<16x32xf32>
    %c0_7 = arith.constant 0 : index
    %c0_8 = arith.constant 0 : index
    %9 = vector.load %arg5[%c0_7, %c0_8] : memref<32x32xbf16, #tpu.memory_space<vmem>>, vector<32x32xbf16>
    %cst_9 = arith.constant dense<0.000000e+00> : vector<16x32xf32>
    %10 = tpu.matmul %3, %9, %cst_9 {dimension_numbers = #tpu.dot_dimension_numbers<[1], [0], [0], [1], [0, 0, 1, 1], [], []>} : vector<16x32xbf16>, vector<32x32xbf16>, vector<16x32xf32> -> vector<16x32xf32>
    %c0_10 = arith.constant 0 : index
    %c0_11 = arith.constant 0 : index
    %11 = vector.load %arg6[%c0_10, %c0_11] : memref<1x32xf32, #tpu.memory_space<vmem>>, vector<1x32xf32>
    %12 = vector.broadcast %11 : vector<1x32xf32> to vector<16x32xf32>
    %13 = arith.addf %10, %12 : vector<16x32xf32>
    %c0_12 = arith.constant 0 : index
    %c0_13 = arith.constant 0 : index
    %14 = vector.load %arg7[%c0_12, %c0_13] : memref<32x32xbf16, #tpu.memory_space<vmem>>, vector<32x32xbf16>
    %cst_14 = arith.constant dense<0.000000e+00> : vector<16x32xf32>
    %15 = tpu.matmul %3, %14, %cst_14 {dimension_numbers = #tpu.dot_dimension_numbers<[1], [0], [0], [1], [0, 0, 1, 1], [], []>} : vector<16x32xbf16>, vector<32x32xbf16>, vector<16x32xf32> -> vector<16x32xf32>
    %c0_15 = arith.constant 0 : index
    %c0_16 = arith.constant 0 : index
    %16 = vector.load %arg8[%c0_15, %c0_16] : memref<1x32xf32, #tpu.memory_space<vmem>>, vector<1x32xf32>
    %17 = vector.broadcast %16 : vector<1x32xf32> to vector<16x32xf32>
    %18 = arith.addf %15, %17 : vector<16x32xf32>
    %19 = vector.shape_cast %8 : vector<16x32xf32> to vector<2x8x32xf32>
    %20 = vector.shape_cast %13 : vector<16x32xf32> to vector<2x8x32xf32>
    %21 = vector.shape_cast %18 : vector<16x32xf32> to vector<2x8x32xf32>
    %22 = vector.extract_strided_slice %19 {offsets = [0, 0, 0], sizes = [2, 8, 8], strides = [1, 1, 1]} : vector<2x8x32xf32> to vector<2x8x8xf32>
    %23 = arith.truncf %22 : vector<2x8x8xf32> to vector<2x8x8xbf16>
    %24 = vector.extract_strided_slice %20 {offsets = [0, 0, 0], sizes = [2, 8, 8], strides = [1, 1, 1]} : vector<2x8x32xf32> to vector<2x8x8xf32>
    %25 = arith.truncf %24 : vector<2x8x8xf32> to vector<2x8x8xbf16>
    %26 = vector.extract_strided_slice %21 {offsets = [0, 0, 0], sizes = [2, 8, 8], strides = [1, 1, 1]} : vector<2x8x32xf32> to vector<2x8x8xf32>
    %27 = arith.truncf %26 : vector<2x8x8xf32> to vector<2x8x8xbf16>
    "tpu.trace_start"() <{level = 10 : i32, message = "btd,bsd->bts"}> : () -> ()
    %cst_17 = arith.constant dense<0.000000e+00> : vector<2x8x8xf32>
    %28 = tpu.matmul %23, %25, %cst_17 {dimension_numbers = #tpu.dot_dimension_numbers<[2], [2], [1], [1], [0, 0, 0, 1, 1, 1], [0], [0]>} : vector<2x8x8xbf16>, vector<2x8x8xbf16>, vector<2x8x8xf32> -> vector<2x8x8xf32>
    "tpu.trace_stop"() : () -> ()
    %cst_18 = arith.constant 0.353553385 : f32
    %29 = vector.broadcast %cst_18 : f32 to vector<2x8x8xf32>
    %30 = arith.mulf %28, %29 : vector<2x8x8xf32>
    %cst_19 = arith.constant dense<0xFF800000> : vector<2x8xf32>
    %31 = vector.multi_reduction <maximumf>, %30, %cst_19 [2] : vector<2x8x8xf32> to vector<2x8xf32>
    %32 = vector.shape_cast %31 : vector<2x8xf32> to vector<2x8x1xf32>
    %33 = vector.broadcast %32 : vector<2x8x1xf32> to vector<2x8x8xf32>
    %34 = arith.subf %30, %33 : vector<2x8x8xf32>
    %35 = math.exp %34 : vector<2x8x8xf32>
    %cst_20 = arith.constant dense<0.000000e+00> : vector<2x8xf32>
    %36 = vector.multi_reduction <add>, %35, %cst_20 [2] : vector<2x8x8xf32> to vector<2x8xf32>
    %37 = vector.shape_cast %36 : vector<2x8xf32> to vector<2x8x1xf32>
    %38 = tpu.reciprocal %37 : vector<2x8x1xf32> -> vector<2x8x1xf32>
    %39 = vector.broadcast %38 : vector<2x8x1xf32> to vector<2x8x8xf32>
    %40 = arith.mulf %35, %39 : vector<2x8x8xf32>
    %41 = arith.truncf %40 : vector<2x8x8xf32> to vector<2x8x8xbf16>
    "tpu.trace_start"() <{level = 10 : i32, message = "bts,bsd->btd"}> : () -> ()
    %cst_21 = arith.constant dense<0.000000e+00> : vector<2x8x8xf32>
    %42 = tpu.matmul %41, %27, %cst_21 {dimension_numbers = #tpu.dot_dimension_numbers<[2], [1], [1], [2], [0, 0, 0, 1, 1, 2], [0], [0]>} : vector<2x8x8xbf16>, vector<2x8x8xbf16>, vector<2x8x8xf32> -> vector<2x8x8xf32>
    "tpu.trace_stop"() : () -> ()
    %c0_22 = arith.constant 0 : index
    %c0_23 = arith.constant 0 : index
    %c0_24 = arith.constant 0 : index
    %43 = vector.load %arg20[%c0_22, %c0_23, %c0_24] : memref<2x8x32xf32, #tpu.memory_space<vmem>>, vector<2x8x8xf32>
    tpu.vector_store %arg20[%c0_22, %c0_23, %c0_24], %42 {strides = array<i32>} : memref<2x8x32xf32, #tpu.memory_space<vmem>>, vector<2x8x8xf32>,
    %44 = vector.extract_strided_slice %19 {offsets = [0, 0, 8], sizes = [2, 8, 8], strides = [1, 1, 1]} : vector<2x8x32xf32> to vector<2x8x8xf32>
    %45 = arith.truncf %44 : vector<2x8x8xf32> to vector<2x8x8xbf16>
    %46 = vector.extract_strided_slice %20 {offsets = [0, 0, 8], sizes = [2, 8, 8], strides = [1, 1, 1]} : vector<2x8x32xf32> to vector<2x8x8xf32>
    %47 = arith.truncf %46 : vector<2x8x8xf32> to vector<2x8x8xbf16>
    %48 = vector.extract_strided_slice %21 {offsets = [0, 0, 8], sizes = [2, 8, 8], strides = [1, 1, 1]} : vector<2x8x32xf32> to vector<2x8x8xf32>
    %49 = arith.truncf %48 : vector<2x8x8xf32> to vector<2x8x8xbf16>
    "tpu.trace_start"() <{level = 10 : i32, message = "btd,bsd->bts"}> : () -> ()
    %cst_25 = arith.constant dense<0.000000e+00> : vector<2x8x8xf32>
    %50 = tpu.matmul %45, %47, %cst_25 {dimension_numbers = #tpu.dot_dimension_numbers<[2], [2], [1], [1], [0, 0, 0, 1, 1, 1], [0], [0]>} : vector<2x8x8xbf16>, vector<2x8x8xbf16>, vector<2x8x8xf32> -> vector<2x8x8xf32>
    "tpu.trace_stop"() : () -> ()
    %cst_26 = arith.constant 0.353553385 : f32
    %51 = vector.broadcast %cst_26 : f32 to vector<2x8x8xf32>
    %52 = arith.mulf %50, %51 : vector<2x8x8xf32>
    %cst_27 = arith.constant dense<0xFF800000> : vector<2x8xf32>
    %53 = vector.multi_reduction <maximumf>, %52, %cst_27 [2] : vector<2x8x8xf32> to vector<2x8xf32>
    %54 = vector.shape_cast %53 : vector<2x8xf32> to vector<2x8x1xf32>
    %55 = vector.broadcast %54 : vector<2x8x1xf32> to vector<2x8x8xf32>
    %56 = arith.subf %52, %55 : vector<2x8x8xf32>
    %57 = math.exp %56 : vector<2x8x8xf32>
    %cst_28 = arith.constant dense<0.000000e+00> : vector<2x8xf32>
    %58 = vector.multi_reduction <add>, %57, %cst_28 [2] : vector<2x8x8xf32> to vector<2x8xf32>
    %59 = vector.shape_cast %58 : vector<2x8xf32> to vector<2x8x1xf32>
    %60 = tpu.reciprocal %59 : vector<2x8x1xf32> -> vector<2x8x1xf32>
    %61 = vector.broadcast %60 : vector<2x8x1xf32> to vector<2x8x8xf32>
    %62 = arith.mulf %57, %61 : vector<2x8x8xf32>
    %63 = arith.truncf %62 : vector<2x8x8xf32> to vector<2x8x8xbf16>
    "tpu.trace_start"() <{level = 10 : i32, message = "bts,bsd->btd"}> : () -> ()
    %cst_29 = arith.constant dense<0.000000e+00> : vector<2x8x8xf32>
    %64 = tpu.matmul %63, %49, %cst_29 {dimension_numbers = #tpu.dot_dimension_numbers<[2], [1], [1], [2], [0, 0, 0, 1, 1, 2], [0], [0]>} : vector<2x8x8xbf16>, vector<2x8x8xbf16>, vector<2x8x8xf32> -> vector<2x8x8xf32>
    "tpu.trace_stop"() : () -> ()
    %c0_30 = arith.constant 0 : index
    %c0_31 = arith.constant 0 : index
    %c8 = arith.constant 8 : index
    %65 = vector.load %arg20[%c0_30, %c0_31, %c8] : memref<2x8x32xf32, #tpu.memory_space<vmem>>, vector<2x8x8xf32>
    tpu.vector_store %arg20[%c0_30, %c0_31, %c8], %64 {strides = array<i32>} : memref<2x8x32xf32, #tpu.memory_space<vmem>>, vector<2x8x8xf32>,
    %66 = vector.extract_strided_slice %19 {offsets = [0, 0, 16], sizes = [2, 8, 8], strides = [1, 1, 1]} : vector<2x8x32xf32> to vector<2x8x8xf32>
    %67 = arith.truncf %66 : vector<2x8x8xf32> to vector<2x8x8xbf16>
    %68 = vector.extract_strided_slice %20 {offsets = [0, 0, 16], sizes = [2, 8, 8], strides = [1, 1, 1]} : vector<2x8x32xf32> to vector<2x8x8xf32>
    %69 = arith.truncf %68 : vector<2x8x8xf32> to vector<2x8x8xbf16>
    %70 = vector.extract_strided_slice %21 {offsets = [0, 0, 16], sizes = [2, 8, 8], strides = [1, 1, 1]} : vector<2x8x32xf32> to vector<2x8x8xf32>
    %71 = arith.truncf %70 : vector<2x8x8xf32> to vector<2x8x8xbf16>
    "tpu.trace_start"() <{level = 10 : i32, message = "btd,bsd->bts"}> : () -> ()
    %cst_32 = arith.constant dense<0.000000e+00> : vector<2x8x8xf32>
    %72 = tpu.matmul %67, %69, %cst_32 {dimension_numbers = #tpu.dot_dimension_numbers<[2], [2], [1], [1], [0, 0, 0, 1, 1, 1], [0], [0]>} : vector<2x8x8xbf16>, vector<2x8x8xbf16>, vector<2x8x8xf32> -> vector<2x8x8xf32>
    "tpu.trace_stop"() : () -> ()
    %cst_33 = arith.constant 0.353553385 : f32
    %73 = vector.broadcast %cst_33 : f32 to vector<2x8x8xf32>
    %74 = arith.mulf %72, %73 : vector<2x8x8xf32>
    %cst_34 = arith.constant dense<0xFF800000> : vector<2x8xf32>
    %75 = vector.multi_reduction <maximumf>, %74, %cst_34 [2] : vector<2x8x8xf32> to vector<2x8xf32>
    %76 = vector.shape_cast %75 : vector<2x8xf32> to vector<2x8x1xf32>
    %77 = vector.broadcast %76 : vector<2x8x1xf32> to vector<2x8x8xf32>
    %78 = arith.subf %74, %77 : vector<2x8x8xf32>
    %79 = math.exp %78 : vector<2x8x8xf32>
    %cst_35 = arith.constant dense<0.000000e+00> : vector<2x8xf32>
    %80 = vector.multi_reduction <add>, %79, %cst_35 [2] : vector<2x8x8xf32> to vector<2x8xf32>
    %81 = vector.shape_cast %80 : vector<2x8xf32> to vector<2x8x1xf32>
    %82 = tpu.reciprocal %81 : vector<2x8x1xf32> -> vector<2x8x1xf32>
    %83 = vector.broadcast %82 : vector<2x8x1xf32> to vector<2x8x8xf32>
    %84 = arith.mulf %79, %83 : vector<2x8x8xf32>
    %85 = arith.truncf %84 : vector<2x8x8xf32> to vector<2x8x8xbf16>
    "tpu.trace_start"() <{level = 10 : i32, message = "bts,bsd->btd"}> : () -> ()
    %cst_36 = arith.constant dense<0.000000e+00> : vector<2x8x8xf32>
    %86 = tpu.matmul %85, %71, %cst_36 {dimension_numbers = #tpu.dot_dimension_numbers<[2], [1], [1], [2], [0, 0, 0, 1, 1, 2], [0], [0]>} : vector<2x8x8xbf16>, vector<2x8x8xbf16>, vector<2x8x8xf32> -> vector<2x8x8xf32>
    "tpu.trace_stop"() : () -> ()
    %c0_37 = arith.constant 0 : index
    %c0_38 = arith.constant 0 : index
    %c16 = arith.constant 16 : index
    %87 = vector.load %arg20[%c0_37, %c0_38, %c16] : memref<2x8x32xf32, #tpu.memory_space<vmem>>, vector<2x8x8xf32>
    tpu.vector_store %arg20[%c0_37, %c0_38, %c16], %86 {strides = array<i32>} : memref<2x8x32xf32, #tpu.memory_space<vmem>>, vector<2x8x8xf32>,
    %88 = vector.extract_strided_slice %19 {offsets = [0, 0, 24], sizes = [2, 8, 8], strides = [1, 1, 1]} : vector<2x8x32xf32> to vector<2x8x8xf32>
    %89 = arith.truncf %88 : vector<2x8x8xf32> to vector<2x8x8xbf16>
    %90 = vector.extract_strided_slice %20 {offsets = [0, 0, 24], sizes = [2, 8, 8], strides = [1, 1, 1]} : vector<2x8x32xf32> to vector<2x8x8xf32>
    %91 = arith.truncf %90 : vector<2x8x8xf32> to vector<2x8x8xbf16>
    %92 = vector.extract_strided_slice %21 {offsets = [0, 0, 24], sizes = [2, 8, 8], strides = [1, 1, 1]} : vector<2x8x32xf32> to vector<2x8x8xf32>
    %93 = arith.truncf %92 : vector<2x8x8xf32> to vector<2x8x8xbf16>
    "tpu.trace_start"() <{level = 10 : i32, message = "btd,bsd->bts"}> : () -> ()
    %cst_39 = arith.constant dense<0.000000e+00> : vector<2x8x8xf32>
    %94 = tpu.matmul %89, %91, %cst_39 {dimension_numbers = #tpu.dot_dimension_numbers<[2], [2], [1], [1], [0, 0, 0, 1, 1, 1], [0], [0]>} : vector<2x8x8xbf16>, vector<2x8x8xbf16>, vector<2x8x8xf32> -> vector<2x8x8xf32>
    "tpu.trace_stop"() : () -> ()
    %cst_40 = arith.constant 0.353553385 : f32
    %95 = vector.broadcast %cst_40 : f32 to vector<2x8x8xf32>
    %96 = arith.mulf %94, %95 : vector<2x8x8xf32>
    %cst_41 = arith.constant dense<0xFF800000> : vector<2x8xf32>
    %97 = vector.multi_reduction <maximumf>, %96, %cst_41 [2] : vector<2x8x8xf32> to vector<2x8xf32>
    %98 = vector.shape_cast %97 : vector<2x8xf32> to vector<2x8x1xf32>
    %99 = vector.broadcast %98 : vector<2x8x1xf32> to vector<2x8x8xf32>
    %100 = arith.subf %96, %99 : vector<2x8x8xf32>
    %101 = math.exp %100 : vector<2x8x8xf32>
    %cst_42 = arith.constant dense<0.000000e+00> : vector<2x8xf32>
    %102 = vector.multi_reduction <add>, %101, %cst_42 [2] : vector<2x8x8xf32> to vector<2x8xf32>
    %103 = vector.shape_cast %102 : vector<2x8xf32> to vector<2x8x1xf32>
    %104 = tpu.reciprocal %103 : vector<2x8x1xf32> -> vector<2x8x1xf32>
    %105 = vector.broadcast %104 : vector<2x8x1xf32> to vector<2x8x8xf32>
    %106 = arith.mulf %101, %105 : vector<2x8x8xf32>
    %107 = arith.truncf %106 : vector<2x8x8xf32> to vector<2x8x8xbf16>
    "tpu.trace_start"() <{level = 10 : i32, message = "bts,bsd->btd"}> : () -> ()
    %cst_43 = arith.constant dense<0.000000e+00> : vector<2x8x8xf32>
    %108 = tpu.matmul %107, %93, %cst_43 {dimension_numbers = #tpu.dot_dimension_numbers<[2], [1], [1], [2], [0, 0, 0, 1, 1, 2], [0], [0]>} : vector<2x8x8xbf16>, vector<2x8x8xbf16>, vector<2x8x8xf32> -> vector<2x8x8xf32>
    "tpu.trace_stop"() : () -> ()
    %c0_44 = arith.constant 0 : index
    %c0_45 = arith.constant 0 : index
    %c24 = arith.constant 24 : index
    %109 = vector.load %arg20[%c0_44, %c0_45, %c24] : memref<2x8x32xf32, #tpu.memory_space<vmem>>, vector<2x8x8xf32>
    tpu.vector_store %arg20[%c0_44, %c0_45, %c24], %108 {strides = array<i32>} : memref<2x8x32xf32, #tpu.memory_space<vmem>>, vector<2x8x8xf32>,
    %c0_46 = arith.constant 0 : index
    %c0_47 = arith.constant 0 : index
    %c0_48 = arith.constant 0 : index
    %110 = vector.load %arg20[%c0_46, %c0_47, %c0_48] : memref<2x8x32xf32, #tpu.memory_space<vmem>>, vector<2x8x32xf32>
    %111 = vector.shape_cast %110 : vector<2x8x32xf32> to vector<16x32xf32>
    %112 = arith.truncf %111 : vector<16x32xf32> to vector<16x32xbf16>
    %c0_49 = arith.constant 0 : index
    %c0_50 = arith.constant 0 : index
    %113 = vector.load %arg9[%c0_49, %c0_50] : memref<32x32xbf16, #tpu.memory_space<vmem>>, vector<32x32xbf16>
    %cst_51 = arith.constant dense<0.000000e+00> : vector<16x32xf32>
    %114 = tpu.matmul %112, %113, %cst_51 {dimension_numbers = #tpu.dot_dimension_numbers<[1], [0], [0], [1], [0, 0, 1, 1], [], []>} : vector<16x32xbf16>, vector<32x32xbf16>, vector<16x32xf32> -> vector<16x32xf32>
    %c0_52 = arith.constant 0 : index
    %c0_53 = arith.constant 0 : index
    %115 = vector.load %arg10[%c0_52, %c0_53] : memref<1x32xf32, #tpu.memory_space<vmem>>, vector<1x32xf32>
    %116 = vector.broadcast %115 : vector<1x32xf32> to vector<16x32xf32>
    %117 = arith.addf %114, %116 : vector<16x32xf32>
    %118 = arith.addf %0, %117 : vector<16x32xf32>
    %c0_54 = arith.constant 0 : index
    %c0_55 = arith.constant 0 : index
    %119 = vector.load %arg11[%c0_54, %c0_55] : memref<1x32xf32, #tpu.memory_space<vmem>>, vector<1x32xf32>
    %c0_56 = arith.constant 0 : index
    %c0_57 = arith.constant 0 : index
    %120 = vector.load %arg12[%c0_56, %c0_57] : memref<1x32xf32, #tpu.memory_space<vmem>>, vector<1x32xf32>
    %cst_58 = arith.constant dense<0.000000e+00> : vector<16xf32>
    %121 = vector.multi_reduction <add>, %118, %cst_58 [1] : vector<16x32xf32> to vector<16xf32>
    %122 = vector.shape_cast %121 : vector<16xf32> to vector<16x1xf32>
    %cst_59 = arith.constant 3.200000e+01 : f32
    %123 = vector.broadcast %cst_59 : f32 to vector<16x1xf32>
    %124 = arith.divf %122, %123 : vector<16x1xf32>
    %125 = vector.broadcast %124 : vector<16x1xf32> to vector<16x32xf32>
    %126 = arith.subf %118, %125 : vector<16x32xf32>
    %127 = arith.mulf %126, %126 : vector<16x32xf32>
    %cst_60 = arith.constant dense<0.000000e+00> : vector<16xf32>
    %128 = vector.multi_reduction <add>, %127, %cst_60 [1] : vector<16x32xf32> to vector<16xf32>
    %129 = vector.shape_cast %128 : vector<16xf32> to vector<16x1xf32>
    %cst_61 = arith.constant 3.200000e+01 : f32
    %130 = vector.broadcast %cst_61 : f32 to vector<16x1xf32>
    %131 = arith.divf %129, %130 : vector<16x1xf32>
    %132 = vector.broadcast %124 : vector<16x1xf32> to vector<16x32xf32>
    %133 = arith.subf %118, %132 : vector<16x32xf32>
    %cst_62 = arith.constant 9.99999974E-6 : f32
    %134 = vector.broadcast %cst_62 : f32 to vector<16x1xf32>
    %135 = arith.addf %131, %134 : vector<16x1xf32>
    %136 = math.rsqrt %135 : vector<16x1xf32>
    %137 = vector.broadcast %136 : vector<16x1xf32> to vector<16x32xf32>
    %138 = arith.mulf %133, %137 : vector<16x32xf32>
    %139 = vector.broadcast %119 : vector<1x32xf32> to vector<16x32xf32>
    %140 = arith.mulf %138, %139 : vector<16x32xf32>
    %141 = vector.broadcast %120 : vector<1x32xf32> to vector<16x32xf32>
    %142 = arith.addf %140, %141 : vector<16x32xf32>
    %143 = arith.truncf %142 : vector<16x32xf32> to vector<16x32xbf16>
    %c0_63 = arith.constant 0 : index
    %c0_64 = arith.constant 0 : index
    %144 = vector.load %arg13[%c0_63, %c0_64] : memref<32x64xbf16, #tpu.memory_space<vmem>>, vector<32x64xbf16>
    %cst_65 = arith.constant dense<0.000000e+00> : vector<16x64xf32>
    %145 = tpu.matmul %143, %144, %cst_65 {dimension_numbers = #tpu.dot_dimension_numbers<[1], [0], [0], [1], [0, 0, 1, 1], [], []>} : vector<16x32xbf16>, vector<32x64xbf16>, vector<16x64xf32> -> vector<16x64xf32>
    %c0_66 = arith.constant 0 : index
    %c0_67 = arith.constant 0 : index
    %146 = vector.load %arg14[%c0_66, %c0_67] : memref<1x64xf32, #tpu.memory_space<vmem>>, vector<1x64xf32>
    %147 = vector.broadcast %146 : vector<1x64xf32> to vector<16x64xf32>
    %148 = arith.addf %145, %147 : vector<16x64xf32>
    %cst_68 = arith.constant 0.000000e+00 : f32
    %149 = vector.broadcast %cst_68 : f32 to vector<16x64xf32>
    %150 = arith.maximumf %148, %149 : vector<16x64xf32>
    %151 = arith.truncf %150 : vector<16x64xf32> to vector<16x64xbf16>
    %c0_69 = arith.constant 0 : index
    %c0_70 = arith.constant 0 : index
    %152 = vector.load %arg15[%c0_69, %c0_70] : memref<64x32xbf16, #tpu.memory_space<vmem>>, vector<64x32xbf16>
    %cst_71 = arith.constant dense<0.000000e+00> : vector<16x32xf32>
    %153 = tpu.matmul %151, %152, %cst_71 {dimension_numbers = #tpu.dot_dimension_numbers<[1], [0], [0], [1], [0, 0, 1, 1], [], []>} : vector<16x64xbf16>, vector<64x32xbf16>, vector<16x32xf32> -> vector<16x32xf32>
    %c0_72 = arith.constant 0 : index
    %c0_73 = arith.constant 0 : index
    %154 = vector.load %arg16[%c0_72, %c0_73] : memref<1x32xf32, #tpu.memory_space<vmem>>, vector<1x32xf32>
    %155 = vector.broadcast %154 : vector<1x32xf32> to vector<16x32xf32>
    %156 = arith.addf %153, %155 : vector<16x32xf32>
    %157 = arith.addf %142, %156 : vector<16x32xf32>
    %c0_74 = arith.constant 0 : index
    %c0_75 = arith.constant 0 : index
    %158 = vector.load %arg17[%c0_74, %c0_75] : memref<1x32xf32, #tpu.memory_space<vmem>>, vector<1x32xf32>
    %c0_76 = arith.constant 0 : index
    %c0_77 = arith.constant 0 : index
    %159 = vector.load %arg18[%c0_76, %c0_77] : memref<1x32xf32, #tpu.memory_space<vmem>>, vector<1x32xf32>
    %cst_78 = arith.constant dense<0.000000e+00> : vector<16xf32>
    %160 = vector.multi_reduction <add>, %157, %cst_78 [1] : vector<16x32xf32> to vector<16xf32>
    %161 = vector.shape_cast %160 : vector<16xf32> to vector<16x1xf32>
    %cst_79 = arith.constant 3.200000e+01 : f32
    %162 = vector.broadcast %cst_79 : f32 to vector<16x1xf32>
    %163 = arith.divf %161, %162 : vector<16x1xf32>
    %164 = vector.broadcast %163 : vector<16x1xf32> to vector<16x32xf32>
    %165 = arith.subf %157, %164 : vector<16x32xf32>
    %166 = arith.mulf %165, %165 : vector<16x32xf32>
    %cst_80 = arith.constant dense<0.000000e+00> : vector<16xf32>
    %167 = vector.multi_reduction <add>, %166, %cst_80 [1] : vector<16x32xf32> to vector<16xf32>
    %168 = vector.shape_cast %167 : vector<16xf32> to vector<16x1xf32>
    %cst_81 = arith.constant 3.200000e+01 : f32
    %169 = vector.broadcast %cst_81 : f32 to vector<16x1xf32>
    %170 = arith.divf %168, %169 : vector<16x1xf32>
    %171 = vector.broadcast %163 : vector<16x1xf32> to vector<16x32xf32>
    %172 = arith.subf %157, %171 : vector<16x32xf32>
    %cst_82 = arith.constant 9.99999974E-6 : f32
    %173 = vector.broadcast %cst_82 : f32 to vector<16x1xf32>
    %174 = arith.addf %170, %173 : vector<16x1xf32>
    %175 = math.rsqrt %174 : vector<16x1xf32>
    %176 = vector.broadcast %175 : vector<16x1xf32> to vector<16x32xf32>
    %177 = arith.mulf %172, %176 : vector<16x32xf32>
    %178 = vector.broadcast %158 : vector<1x32xf32> to vector<16x32xf32>
    %179 = arith.mulf %177, %178 : vector<16x32xf32>
    %180 = vector.broadcast %159 : vector<1x32xf32> to vector<16x32xf32>
    %181 = arith.addf %179, %180 : vector<16x32xf32>
    %c0_83 = arith.constant 0 : index
    %c0_84 = arith.constant 0 : index
    %182 = vector.load %arg19[%c0_83, %c0_84] : memref<16x32xf32, #tpu.memory_space<vmem>>, vector<16x32xf32>
    tpu.vector_store %arg19[%c0_83, %c0_84], %181 {strides = array<i32>} : memref<16x32xf32, #tpu.memory_space<vmem>>, vector<16x32xf32>,
    return
  }
  func.func @transform_0(%arg0: i32) -> (i32, i32) {
    %c0_i32 = arith.constant 0 : i32
    %c0_i32_0 = arith.constant 0 : i32
    return %arg0, %c0_i32 : i32, i32
  }
  func.func @transform_1(%arg0: i32) -> (i32, i32) {
    %c0_i32 = arith.constant 0 : i32
    %c0_i32_0 = arith.constant 0 : i32
    return %arg0, %c0_i32 : i32, i32
  }
  func.func @transform_2(%arg0: i32) -> (i32, i32) {
    %c0_i32 = arith.constant 0 : i32
    %c0_i32_0 = arith.constant 0 : i32
    %c0_i32_1 = arith.constant 0 : i32
    return %c0_i32, %c0_i32_0 : i32, i32
  }
  func.func @transform_3(%arg0: i32) -> (i32, i32) {
    %c0_i32 = arith.constant 0 : i32
    %c0_i32_0 = arith.constant 0 : i32
    %c0_i32_1 = arith.constant 0 : i32
    return %c0_i32, %c0_i32_0 : i32, i32
  }
  func.func @transform_4(%arg0: i32) -> (i32, i32) {
    %c0_i32 = arith.constant 0 : i32
    %c0_i32_0 = arith.constant 0 : i32
    %c0_i32_1 = arith.constant 0 : i32
    return %c0_i32, %c0_i32_0 : i32, i32
  }
  func.func @transform_5(%arg0: i32) -> (i32, i32) {
    %c0_i32 = arith.constant 0 : i32
    %c0_i32_0 = arith.constant 0 : i32
    %c0_i32_1 = arith.constant 0 : i32
    return %c0_i32, %c0_i32_0 : i32, i32
  }
  func.func @transform_6(%arg0: i32) -> (i32, i32) {
    %c0_i32 = arith.constant 0 : i32
    %c0_i32_0 = arith.constant 0 : i32
    %c0_i32_1 = arith.constant 0 : i32
    return %c0_i32, %c0_i32_0 : i32, i32
  }
  func.func @transform_7(%arg0: i32) -> (i32, i32) {
    %c0_i32 = arith.constant 0 : i32
    %c0_i32_0 = arith.constant 0 : i32
    %c0_i32_1 = arith.constant 0 : i32
    return %c0_i32, %c0_i32_0 : i32, i32
  }
  func.func @transform_8(%arg0: i32) -> (i32, i32) {
    %c0_i32 = arith.constant 0 : i32
    %c0_i32_0 = arith.constant 0 : i32
    %c0_i32_1 = arith.constant 0 : i32
    return %c0_i32, %c0_i32_0 : i32, i32
  }
  func.func @transform_9(%arg0: i32) -> (i32, i32) {
    %c0_i32 = arith.constant 0 : i32
    %c0_i32_0 = arith.constant 0 : i32
    %c0_i32_1 = arith.constant 0 : i32
    return %c0_i32, %c0_i32_0 : i32, i32
  }
  func.func @transform_10(%arg0: i32) -> (i32, i32) {
    %c0_i32 = arith.constant 0 : i32
    %c0_i32_0 = arith.constant 0 : i32
    %c0_i32_1 = arith.constant 0 : i32
    return %c0_i32, %c0_i32_0 : i32, i32
  }
  func.func @transform_11(%arg0: i32) -> (i32, i32) {
    %c0_i32 = arith.constant 0 : i32
    %c0_i32_0 = arith.constant 0 : i32
    %c0_i32_1 = arith.constant 0 : i32
    return %c0_i32, %c0_i32_0 : i32, i32
  }
  func.func @transform_12(%arg0: i32) -> (i32, i32) {
    %c0_i32 = arith.constant 0 : i32
    %c0_i32_0 = arith.constant 0 : i32
    %c0_i32_1 = arith.constant 0 : i32
    return %c0_i32, %c0_i32_0 : i32, i32
  }
  func.func @transform_13(%arg0: i32) -> (i32, i32) {
    %c0_i32 = arith.constant 0 : i32
    %c0_i32_0 = arith.constant 0 : i32
    %c0_i32_1 = arith.constant 0 : i32
    return %c0_i32, %c0_i32_0 : i32, i32
  }
  func.func @transform_14(%arg0: i32) -> (i32, i32) {
    %c0_i32 = arith.constant 0 : i32
    %c0_i32_0 = arith.constant 0 : i32
    %c0_i32_1 = arith.constant 0 : i32
    return %c0_i32, %c0_i32_0 : i32, i32
  }
  func.func @transform_15(%arg0: i32) -> (i32, i32) {
    %c0_i32 = arith.constant 0 : i32
    %c0_i32_0 = arith.constant 0 : i32
    %c0_i32_1 = arith.constant 0 : i32
    return %c0_i32, %c0_i32_0 : i32, i32
  }
  func.func @transform_16(%arg0: i32) -> (i32, i32) {
    %c0_i32 = arith.constant 0 : i32
    %c0_i32_0 = arith.constant 0 : i32
    %c0_i32_1 = arith.constant 0 : i32
    return %c0_i32, %c0_i32_0 : i32, i32
  }
  func.func @transform_17(%arg0: i32) -> (i32, i32) {
    %c0_i32 = arith.constant 0 : i32
    %c0_i32_0 = arith.constant 0 : i32
    %c0_i32_1 = arith.constant 0 : i32
    return %c0_i32, %c0_i32_0 : i32, i32
  }
  func.func @transform_18(%arg0: i32) -> (i32, i32) {
    %c0_i32 = arith.constant 0 : i32
    %c0_i32_0 = arith.constant 0 : i32
    return %arg0, %c0_i32 : i32, i32
  }
}

</mosaic_0001>

<llo_original>
// kernel: rel_transformer_decoder_layer.1
$region0: #{rel_transformer_decoder_layer.1}
  #allocation0 [shape = 'u32[]', space=smem, size = 0x4, offset = 0x4, fixed_abs, tag = 'smem constant byte address 0x4 - core index']
  #allocation1 [shape = 'u32[144,128]{1,0:T(1,128)}', space=vmem, size = 0x12000, scoped, tag = 'internal scratch']
  #allocation2 [shape = 'f32[2,8,32]{2,1,0:T(8,128)}', space=vmem, size = 0x2000, scoped, tag = 'scratch operand']
  %s0 = inlined_call_operand.vmem [shape: f32[16,32], index: 0, kind: input, shape index: {}]
  %s1 = inlined_call_operand.vmem [shape: f32[16,32], index: 1, kind: input, shape index: {}]
  %s2 = inlined_call_operand.vmem [shape: bf16[32,32], index: 2, kind: input, shape index: {}]
  %s3 = inlined_call_operand.hbm [shape: f32[1,32], index: 3, kind: input, shape index: {}]
  %s4 = inlined_call_operand.vmem [shape: bf16[32,32], index: 4, kind: input, shape index: {}]
  %s5 = inlined_call_operand.hbm [shape: f32[1,32], index: 5, kind: input, shape index: {}]
  %s6 = inlined_call_operand.vmem [shape: bf16[32,32], index: 6, kind: input, shape index: {}]
  %s7 = inlined_call_operand.hbm [shape: f32[1,32], index: 7, kind: input, shape index: {}]
  %s8 = inlined_call_operand.vmem [shape: bf16[32,32], index: 8, kind: input, shape index: {}]
  %s9 = inlined_call_operand.hbm [shape: f32[1,32], index: 9, kind: input, shape index: {}]
  %s10 = inlined_call_operand.hbm [shape: f32[1,32], index: 10, kind: input, shape index: {}]
  %s11 = inlined_call_operand.hbm [shape: f32[1,32], index: 11, kind: input, shape index: {}]
  %s12 = inlined_call_operand.hbm [shape: bf16[32,64], index: 12, kind: input, shape index: {}]
  %s13 = inlined_call_operand.hbm [shape: f32[1,64], index: 13, kind: input, shape index: {}]
  %s14 = inlined_call_operand.vmem [shape: bf16[64,32], index: 14, kind: input, shape index: {}]
  %s15 = inlined_call_operand.hbm [shape: f32[1,32], index: 15, kind: input, shape index: {}]
  %s16 = inlined_call_operand.hbm [shape: f32[1,32], index: 16, kind: input, shape index: {}]
  %s17 = inlined_call_operand.hbm [shape: f32[1,32], index: 17, kind: input, shape index: {}]
  %s18 = inlined_call_operand.hbm [shape: f32[16,32], index: 18, kind: output, shape index: {}]
  %s19 = sld [smem:[#allocation0]]
  $region126: #{rel_transformer_decoder_layer.1} parent=0
    _
  %s21 = ssub.s32 1, %s19
  %s22 = scalar_select 0, %s21, %s19
  $region1: #{rel_transformer_decoder_layer.1} parent=0
    #allocation3 [shape = 'u8[512]{0}', space=vmem, size = 0x400, scoped, tag = 'input window, operand 3, single buffered']
    #allocation4 [shape = 's32[1]{0}', space=sflag, size = 0x4, scoped, tag = 'scoped memory for rel_transformer_decoder_layer.1']
    #allocation5 [shape = 's32[1]{0}', space=sflag, size = 0x4, scoped, tag = 'scoped memory for rel_transformer_decoder_layer.1']
    #allocation6 [shape = 'u8[512]{0}', space=vmem, size = 0x400, scoped, tag = 'input window, operand 5, single buffered']
    #allocation7 [shape = 's32[1]{0}', space=sflag, size = 0x4, scoped, tag = 'scoped memory for rel_transformer_decoder_layer.1']
    #allocation8 [shape = 'u8[512]{0}', space=vmem, size = 0x400, scoped, tag = 'input window, operand 7, single buffered']
    #allocation9 [shape = 'u8[512]{0}', space=vmem, size = 0x400, scoped, tag = 'input window, operand 9, single buffered']
    #allocation10 [shape = 's32[1]{0}', space=sflag, size = 0x4, scoped, tag = 'scoped memory for rel_transformer_decoder_layer.1']
    #allocation11 [shape = 'u8[512]{0}', space=vmem, size = 0x400, scoped, tag = 'input window, operand 10, single buffered']
    #allocation12 [shape = 'u8[512]{0}', space=vmem, size = 0x400, scoped, tag = 'input window, operand 11, single buffered']
    #allocation13 [shape = 's32[1]{0}', space=sflag, size = 0x4, scoped, tag = 'scoped memory for rel_transformer_decoder_layer.1']
    #allocation14 [shape = 'u8[8192]{0}', space=vmem, size = 0x2000, scoped, tag = 'input window, operand 12, single buffered']
    #allocation15 [shape = 'u8[512]{0}', space=vmem, size = 0x400, scoped, tag = 'input window, operand 13, single buffered']
    #allocation16 [shape = 's32[1]{0}', space=sflag, size = 0x4, scoped, tag = 'scoped memory for rel_transformer_decoder_layer.1']
    #allocation17 [shape = 'u8[512]{0}', space=vmem, size = 0x400, scoped, tag = 'input window, operand 15, single buffered']
    #allocation18 [shape = 'u8[512]{0}', space=vmem, size = 0x400, scoped, tag = 'input window, operand 16, single buffered']
    #allocation19 [shape = 's32[1]{0}', space=sflag, size = 0x4, scoped, tag = 'scoped memory for rel_transformer_decoder_layer.1']
    #allocation20 [shape = 'u8[512]{0}', space=vmem, size = 0x400, scoped, tag = 'input window, operand 17, single buffered']
    #allocation21 [shape = 'u8[8192]{0}', space=vmem, size = 0x2000, scoped, tag = 'output window, operand 0, single buffered']
    %23 = vsyncpa [#allocation4], 0
    %24 = vsyncpa [#allocation7], 0
    %25 = vsyncpa [#allocation10], 0
    %26 = vsyncpa [#allocation13], 0
    %27 = vsyncpa [#allocation16], 0
    %28 = vsyncpa [#allocation19], 0
    %29 = vsyncpa [#allocation5], 0
    // Predicated region
    $region2: #{rel_transformer_decoder_layer.1} parent=1 // pred_check
      _
    $region3: #{rel_transformer_decoder_layer.1} parent=1 // pred_check_branch
      %31 = sbr.rel (0) target = $region5
    $region4: #{rel_transformer_decoder_layer.1} parent=1 // pred_region
      _
    $region5: #{rel_transformer_decoder_layer.1} parent=1 // pred_fallthru
      _
    // Predicated region
    $region6: #{rel_transformer_decoder_layer.1} parent=1 // pred_check
      _
    $region7: #{rel_transformer_decoder_layer.1} parent=1 // pred_check_branch
      %33 = sbr.rel (0) target = $region9
    $region8: #{rel_transformer_decoder_layer.1} parent=1 // pred_region
      _
    $region9: #{rel_transformer_decoder_layer.1} parent=1 // pred_fallthru
      _
    // Predicated region
    $region10: #{rel_transformer_decoder_layer.1} parent=1 // pred_check
      _
    $region11: #{rel_transformer_decoder_layer.1} parent=1 // pred_check_branch
      %35 = sbr.rel (0) target = $region13
    $region12: #{rel_transformer_decoder_layer.1} parent=1 // pred_region
      _
    $region13: #{rel_transformer_decoder_layer.1} parent=1 // pred_fallthru
      _
    // Predicated region
    $region14: #{rel_transformer_decoder_layer.1} parent=1 // pred_check
      _
    $region15: #{rel_transformer_decoder_layer.1} parent=1 // pred_check_branch
      %37 = sbr.rel (0) target = $region17
    $region16: #{rel_transformer_decoder_layer.1} parent=1 // pred_region
      %s39 = ssub.s32 16, 16
      %40 = vsyncadd [#allocation4], %s39
      %s42 = sshll.u32 [#allocation3], 4
      %s43 = int_to_ptr.vmem [resolvable:$true] %s42
      %45 = dma.hbm_to_vmem [thread:$0]  %s3, 16, %s43, [#allocation4]
    $region17: #{rel_transformer_decoder_layer.1} parent=1 // pred_fallthru
      _
    // Predicated region
    $region18: #{rel_transformer_decoder_layer.1} parent=1 // pred_check
      _
    $region19: #{rel_transformer_decoder_layer.1} parent=1 // pred_check_branch
      %47 = sbr.rel (0) target = $region21
    $region20: #{rel_transformer_decoder_layer.1} parent=1 // pred_region
      _
    $region21: #{rel_transformer_decoder_layer.1} parent=1 // pred_fallthru
      _
    // Predicated region
    $region22: #{rel_transformer_decoder_layer.1} parent=1 // pred_check
      _
    $region23: #{rel_transformer_decoder_layer.1} parent=1 // pred_check_branch
      %49 = sbr.rel (0) target = $region25
    $region24: #{rel_transformer_decoder_layer.1} parent=1 // pred_region
      %s51 = ssub.s32 16, 16
      %52 = vsyncadd [#allocation7], %s51
      %s54 = sshll.u32 [#allocation6], 4
      %s55 = int_to_ptr.vmem [resolvable:$true] %s54
      %57 = dma.hbm_to_vmem [thread:$0]  %s5, 16, %s55, [#allocation7]
    $region25: #{rel_transformer_decoder_layer.1} parent=1 // pred_fallthru
      _
    // Predicated region
    $region26: #{rel_transformer_decoder_layer.1} parent=1 // pred_check
      _
    $region27: #{rel_transformer_decoder_layer.1} parent=1 // pred_check_branch
      %59 = sbr.rel (0) target = $region29
    $region28: #{rel_transformer_decoder_layer.1} parent=1 // pred_region
      _
    $region29: #{rel_transformer_decoder_layer.1} parent=1 // pred_fallthru
      _
    // Predicated region
    $region30: #{rel_transformer_decoder_layer.1} parent=1 // pred_check
      _
    $region31: #{rel_transformer_decoder_layer.1} parent=1 // pred_check_branch
      %61 = sbr.rel (0) target = $region33
    $region32: #{rel_transformer_decoder_layer.1} parent=1 // pred_region
      %s63 = ssub.s32 16, 16
      %64 = vsyncadd [#allocation7], %s63
      %s66 = sshll.u32 [#allocation8], 4
      %s67 = int_to_ptr.vmem [resolvable:$true] %s66
      %69 = dma.hbm_to_vmem [thread:$0]  %s7, 16, %s67, [#allocation7]
    $region33: #{rel_transformer_decoder_layer.1} parent=1 // pred_fallthru
      _
    // Predicated region
    $region34: #{rel_transformer_decoder_layer.1} parent=1 // pred_check
      _
    $region35: #{rel_transformer_decoder_layer.1} parent=1 // pred_check_branch
      %71 = sbr.rel (0) target = $region37
    $region36: #{rel_transformer_decoder_layer.1} parent=1 // pred_region
      _
    $region37: #{rel_transformer_decoder_layer.1} parent=1 // pred_fallthru
      _
    // Predicated region
    $region38: #{rel_transformer_decoder_layer.1} parent=1 // pred_check
      _
    $region39: #{rel_transformer_decoder_layer.1} parent=1 // pred_check_branch
      %73 = sbr.rel (0) target = $region41
    $region40: #{rel_transformer_decoder_layer.1} parent=1 // pred_region
      %s75 = ssub.s32 16, 16
      %76 = vsyncadd [#allocation10], %s75
      %s78 = sshll.u32 [#allocation9], 4
      %s79 = int_to_ptr.vmem [resolvable:$true] %s78
      %81 = dma.hbm_to_vmem [thread:$0]  %s9, 16, %s79, [#allocation10]
    $region41: #{rel_transformer_decoder_layer.1} parent=1 // pred_fallthru
      _
    // Predicated region
    $region42: #{rel_transformer_decoder_layer.1} parent=1 // pred_check
      _
    $region43: #{rel_transformer_decoder_layer.1} parent=1 // pred_check_branch
      %83 = sbr.rel (0) target = $region45
    $region44: #{rel_transformer_decoder_layer.1} parent=1 // pred_region
      %s85 = ssub.s32 16, 16
      %86 = vsyncadd [#allocation10], %s85
      %s88 = sshll.u32 [#allocation11], 4
      %s89 = int_to_ptr.vmem [resolvable:$true] %s88
      %91 = dma.hbm_to_vmem [thread:$0]  %s10, 16, %s89, [#allocation10]
    $region45: #{rel_transformer_decoder_layer.1} parent=1 // pred_fallthru
      _
    // Predicated region
    $region46: #{rel_transformer_decoder_layer.1} parent=1 // pred_check
      _
    $region47: #{rel_transformer_decoder_layer.1} parent=1 // pred_check_branch
      %93 = sbr.rel (0) target = $region49
    $region48: #{rel_transformer_decoder_layer.1} parent=1 // pred_region
      %s95 = ssub.s32 16, 16
      %96 = vsyncadd [#allocation13], %s95
      %s98 = sshll.u32 [#allocation12], 4
      %s99 = int_to_ptr.vmem [resolvable:$true] %s98
      %101 = dma.hbm_to_vmem [thread:$0]  %s11, 16, %s99, [#allocation13]
    $region49: #{rel_transformer_decoder_layer.1} parent=1 // pred_fallthru
      _
    // Predicated region
    $region50: #{rel_transformer_decoder_layer.1} parent=1 // pred_check
      _
    $region51: #{rel_transformer_decoder_layer.1} parent=1 // pred_check_branch
      %103 = sbr.rel (0) target = $region53
    $region52: #{rel_transformer_decoder_layer.1} parent=1 // pred_region
      %s105 = ssub.s32 256, 256
      %106 = vsyncadd [#allocation13], %s105
      %s107 = sshll.u32 [#allocation14], 4
      %s108 = int_to_ptr.vmem [resolvable:$true] %s107
      %113 = dma.hbm_to_vmem [thread:$0]  %s12, 256, %s108, [#allocation13], 64, 64, 4
    $region53: #{rel_transformer_decoder_layer.1} parent=1 // pred_fallthru
      _
    // Predicated region
    $region54: #{rel_transformer_decoder_layer.1} parent=1 // pred_check
      _
    $region55: #{rel_transformer_decoder_layer.1} parent=1 // pred_check_branch
      %115 = sbr.rel (0) target = $region57
    $region56: #{rel_transformer_decoder_layer.1} parent=1 // pred_region
      %s117 = ssub.s32 16, 16
      %118 = vsyncadd [#allocation16], %s117
      %s120 = sshll.u32 [#allocation15], 4
      %s121 = int_to_ptr.vmem [resolvable:$true] %s120
      %123 = dma.hbm_to_vmem [thread:$0]  %s13, 16, %s121, [#allocation16]
    $region57: #{rel_transformer_decoder_layer.1} parent=1 // pred_fallthru
      _
    // Predicated region
    $region58: #{rel_transformer_decoder_layer.1} parent=1 // pred_check
      _
    $region59: #{rel_transformer_decoder_layer.1} parent=1 // pred_check_branch
      %125 = sbr.rel (0) target = $region61
    $region60: #{rel_transformer_decoder_layer.1} parent=1 // pred_region
      _
    $region61: #{rel_transformer_decoder_layer.1} parent=1 // pred_fallthru
      _
    // Predicated region
    $region62: #{rel_transformer_decoder_layer.1} parent=1 // pred_check
      _
    $region63: #{rel_transformer_decoder_layer.1} parent=1 // pred_check_branch
      %127 = sbr.rel (0) target = $region65
    $region64: #{rel_transformer_decoder_layer.1} parent=1 // pred_region
      %s129 = ssub.s32 16, 16
      %130 = vsyncadd [#allocation16], %s129
      %s132 = sshll.u32 [#allocation17], 4
      %s133 = int_to_ptr.vmem [resolvable:$true] %s132
      %135 = dma.hbm_to_vmem [thread:$0]  %s15, 16, %s133, [#allocation16]
    $region65: #{rel_transformer_decoder_layer.1} parent=1 // pred_fallthru
      _
    // Predicated region
    $region66: #{rel_transformer_decoder_layer.1} parent=1 // pred_check
      _
    $region67: #{rel_transformer_decoder_layer.1} parent=1 // pred_check_branch
      %137 = sbr.rel (0) target = $region69
    $region68: #{rel_transformer_decoder_layer.1} parent=1 // pred_region
      %s139 = ssub.s32 16, 16
      %140 = vsyncadd [#allocation19], %s139
      %s142 = sshll.u32 [#allocation18], 4
      %s143 = int_to_ptr.vmem [resolvable:$true] %s142
      %145 = dma.hbm_to_vmem [thread:$0]  %s16, 16, %s143, [#allocation19]
    $region69: #{rel_transformer_decoder_layer.1} parent=1 // pred_fallthru
      _
    // Predicated region
    $region70: #{rel_transformer_decoder_layer.1} parent=1 // pred_check
      _
    $region71: #{rel_transformer_decoder_layer.1} parent=1 // pred_check_branch
      %147 = sbr.rel (0) target = $region73
    $region72: #{rel_transformer_decoder_layer.1} parent=1 // pred_region
      %s149 = ssub.s32 16, 16
      %150 = vsyncadd [#allocation19], %s149
      %s152 = sshll.u32 [#allocation20], 4
      %s153 = int_to_ptr.vmem [resolvable:$true] %s152
      %155 = dma.hbm_to_vmem [thread:$0]  %s17, 16, %s153, [#allocation19]
    $region73: #{rel_transformer_decoder_layer.1} parent=1 // pred_fallthru
      _
    // Predicated region
    $region74: #{rel_transformer_decoder_layer.1} parent=1 // pred_check
      _
    $region75: #{rel_transformer_decoder_layer.1} parent=1 // pred_check_branch
      %157 = sbr.rel (0) target = $region77
    $region76: #{rel_transformer_decoder_layer.1} parent=1 // pred_region
      %158 = dma.done [#allocation4], 16
    $region77: #{rel_transformer_decoder_layer.1} parent=1 // pred_fallthru
      _
    // Predicated region
    $region78: #{rel_transformer_decoder_layer.1} parent=1 // pred_check
      _
    $region79: #{rel_transformer_decoder_layer.1} parent=1 // pred_check_branch
      %160 = sbr.rel (0) target = $region81
    $region80: #{rel_transformer_decoder_layer.1} parent=1 // pred_region
      %161 = dma.done [#allocation7], 16
    $region81: #{rel_transformer_decoder_layer.1} parent=1 // pred_fallthru
      _
    // Predicated region
    $region82: #{rel_transformer_decoder_layer.1} parent=1 // pred_check
      _
    $region83: #{rel_transformer_decoder_layer.1} parent=1 // pred_check_branch
      %163 = sbr.rel (0) target = $region85
    $region84: #{rel_transformer_decoder_layer.1} parent=1 // pred_region
      %164 = dma.done [#allocation7], 16
    $region85: #{rel_transformer_decoder_layer.1} parent=1 // pred_fallthru
      _
    // Predicated region
    $region86: #{rel_transformer_decoder_layer.1} parent=1 // pred_check
      _
    $region87: #{rel_transformer_decoder_layer.1} parent=1 // pred_check_branch
      %166 = sbr.rel (0) target = $region89
    $region88: #{rel_transformer_decoder_layer.1} parent=1 // pred_region
      %167 = dma.done [#allocation10], 16
    $region89: #{rel_transformer_decoder_layer.1} parent=1 // pred_fallthru
      _
    // Predicated region
    $region90: #{rel_transformer_decoder_layer.1} parent=1 // pred_check
      _
    $region91: #{rel_transformer_decoder_layer.1} parent=1 // pred_check_branch
      %169 = sbr.rel (0) target = $region93
    $region92: #{rel_transformer_decoder_layer.1} parent=1 // pred_region
      %170 = dma.done [#allocation10], 16
    $region93: #{rel_transformer_decoder_layer.1} parent=1 // pred_fallthru
      _
    // Predicated region
    $region94: #{rel_transformer_decoder_layer.1} parent=1 // pred_check
      _
    $region95: #{rel_transformer_decoder_layer.1} parent=1 // pred_check_branch
      %172 = sbr.rel (0) target = $region97
    $region96: #{rel_transformer_decoder_layer.1} parent=1 // pred_region
      %173 = dma.done [#allocation13], 16
    $region97: #{rel_transformer_decoder_layer.1} parent=1 // pred_fallthru
      _
    // Predicated region
    $region98: #{rel_transformer_decoder_layer.1} parent=1 // pred_check
      _
    $region99: #{rel_transformer_decoder_layer.1} parent=1 // pred_check_branch
      %175 = sbr.rel (0) target = $region101
    $region100: #{rel_transformer_decoder_layer.1} parent=1 // pred_region
      %176 = dma.done [#allocation13], 256
    $region101: #{rel_transformer_decoder_layer.1} parent=1 // pred_fallthru
      _
    // Predicated region
    $region102: #{rel_transformer_decoder_layer.1} parent=1 // pred_check
      _
    $region103: #{rel_transformer_decoder_layer.1} parent=1 // pred_check_branch
      %178 = sbr.rel (0) target = $region105
    $region104: #{rel_transformer_decoder_layer.1} parent=1 // pred_region
      %179 = dma.done [#allocation16], 16
    $region105: #{rel_transformer_decoder_layer.1} parent=1 // pred_fallthru
      _
    // Predicated region
    $region106: #{rel_transformer_decoder_layer.1} parent=1 // pred_check
      _
    $region107: #{rel_transformer_decoder_layer.1} parent=1 // pred_check_branch
      %181 = sbr.rel (0) target = $region109
    $region108: #{rel_transformer_decoder_layer.1} parent=1 // pred_region
      %182 = dma.done [#allocation16], 16
    $region109: #{rel_transformer_decoder_layer.1} parent=1 // pred_fallthru
      _
    // Predicated region
    $region110: #{rel_transformer_decoder_layer.1} parent=1 // pred_check
      _
    $region111: #{rel_transformer_decoder_layer.1} parent=1 // pred_check_branch
      %184 = sbr.rel (0) target = $region113
    $region112: #{rel_transformer_decoder_layer.1} parent=1 // pred_region
      %185 = dma.done [#allocation19], 16
    $region113: #{rel_transformer_decoder_layer.1} parent=1 // pred_fallthru
      _
    // Predicated region
    $region114: #{rel_transformer_decoder_layer.1} parent=1 // pred_check
      _
    $region115: #{rel_transformer_decoder_layer.1} parent=1 // pred_check_branch
      %187 = sbr.rel (0) target = $region117
    $region116: #{rel_transformer_decoder_layer.1} parent=1 // pred_region
      %188 = dma.done [#allocation19], 16
    $region117: #{rel_transformer_decoder_layer.1} parent=1 // pred_fallthru
      _
    %v190 = vld [vmem:[%s0] sm:$0xff]
    %v191 = vld [vmem:[%s0 + $0x8] sm:$0xff]
    %v192 = vld [vmem:[%s1] sm:$0xff]
    %v193 = vld [vmem:[%s1 + $0x8] sm:$0xff]
    %v194 = vpack.c.bf16 %v191, %v190
    %v195 = vpack.c.bf16 %v193, %v192
    %v196 = vld [vmem:[%s2] sm:$0xf]
    %v197 = vld [vmem:[%s2 + $0x4] sm:$0xf]
    %v198 = vld [vmem:[%s2 + $0x8] sm:$0xf]
    %v199 = vld [vmem:[%s2 + $0xc] sm:$0xf]
    %v200 = vld [vmem:[#allocation3] sm:$0x1]
    %v202 = vlaneseq
    %v203 = vshrl.u32 %v202, 7
    %v204 = vsub.s32 0, %v203
    %v205 = vrot.slane %v200, %v204
    %v211 = vunpack.c.l.b16 %v196
    %v212 = vunpack.c.l.b16 %v197
    %v213 = vunpack.c.l.b16 %v198
    %v214 = vunpack.c.l.b16 %v199
    %v215 = vpack.c.b16 %v212, %v211
    %v216 = vpack.c.b16 %v214, %v213
    %vm219 = vcmask 261120
    %v221 = vsel %vm219, %v194, 0
    %223 = vmatprep.subr.bf16.mxu0 0
    %224 = vmatpush1.bf16.msra.mxu0 %v215
    %225 = vmatprep.subr.bf16.mxu0 0
    %226 = vmatpush1.bf16.msra.mxu0 %v216
    %227 = vmatprep.subr.bf16.mxu0 0
    %228 = vmatpush1.bf16.msra.mxu0 0
    %229 = vmatprep.subr.bf16.mxu0 0
    %230 = vmatpush1.bf16.msra.mxu0 0
    %231 = vmatprep.subr.bf16.mxu0 0
    %232 = vmatpush1.bf16.msra.mxu0 0
    %233 = vmatprep.subr.bf16.mxu0 0
    %234 = vmatpush1.bf16.msra.mxu0 0
    %235 = vmatprep.subr.bf16.mxu0 0
    %236 = vmatpush1.bf16.msra.mxu0 0
    %237 = vmatprep.subr.bf16.mxu0 0
    %238 = vmatpush1.bf16.msra.mxu0 0
    %239 = vmatprep.subr.bf16.mxu0 0
    %240 = vmatpush1.bf16.msra.mxu0 0
    %241 = vmatprep.subr.bf16.mxu0 0
    %242 = vmatpush1.bf16.msra.mxu0 0
    %243 = vmatprep.subr.bf16.mxu0 0
    %244 = vmatpush1.bf16.msra.mxu0 0
    %245 = vmatprep.subr.bf16.mxu0 0
    %246 = vmatpush1.bf16.msra.mxu0 0
    %247 = vmatprep.subr.bf16.mxu0 0
    %248 = vmatpush1.bf16.msra.mxu0 0
    %249 = vmatprep.subr.bf16.mxu0 0
    %250 = vmatpush1.bf16.msra.mxu0 0
    %251 = vmatprep.subr.bf16.mxu0 0
    %252 = vmatpush1.bf16.msra.mxu0 0
    %253 = vmatprep.subr.bf16.mxu0 0
    %254 = vmatpush1.bf16.msra.mxu0 0
    %255 = vmatprep.mubr.bf16.mxu0 0
    %256 = vmatmul.mubr.bf16.gmra.mrb[0].mxu0 %v221
    %v257 = vpop.f32.mrb[0].mxu0
    %v258 = vadd.f32 %v205, %v257
    %v259 = vpop.f32.mrb[0].mxu0
    %v260 = vpop.f32.mrb[0].mxu0
    %v261 = vadd.f32 %v205, %v260
    %v262 = vpop.f32.mrb[0].mxu0
    %263 = vdwg.mxu0
    %v264 = vld [vmem:[%s4] sm:$0xf]
    %v265 = vld [vmem:[%s4 + $0x4] sm:$0xf]
    %v266 = vld [vmem:[%s4 + $0x8] sm:$0xf]
    %v267 = vld [vmem:[%s4 + $0xc] sm:$0xf]
    %v268 = vld [vmem:[#allocation6] sm:$0x1]
    %v270 = vlaneseq
    %v271 = vshrl.u32 %v270, 7
    %v272 = vsub.s32 0, %v271
    %v273 = vrot.slane %v268, %v272
    %v279 = vunpack.c.l.b16 %v264
    %v280 = vunpack.c.l.b16 %v265
    %v281 = vunpack.c.l.b16 %v266
    %v282 = vunpack.c.l.b16 %v267
    %v283 = vpack.c.b16 %v280, %v279
    %v284 = vpack.c.b16 %v282, %v281
    %v288 = vsel %vm219, %v195, 0
    %290 = vmatprep.subr.bf16.mxu0 0
    %291 = vmatpush1.bf16.msra.mxu0 %v283
    %292 = vmatprep.subr.bf16.mxu0 0
    %293 = vmatpush1.bf16.msra.mxu0 %v284
    %294 = vmatprep.subr.bf16.mxu0 0
    %295 = vmatpush1.bf16.msra.mxu0 0
    %296 = vmatprep.subr.bf16.mxu0 0
    %297 = vmatpush1.bf16.msra.mxu0 0
    %298 = vmatprep.subr.bf16.mxu0 0
    %299 = vmatpush1.bf16.msra.mxu0 0
    %300 = vmatprep.subr.bf16.mxu0 0
    %301 = vmatpush1.bf16.msra.mxu0 0
    %302 = vmatprep.subr.bf16.mxu0 0
    %303 = vmatpush1.bf16.msra.mxu0 0
    %304 = vmatprep.subr.bf16.mxu0 0
    %305 = vmatpush1.bf16.msra.mxu0 0
    %306 = vmatprep.subr.bf16.mxu0 0
    %307 = vmatpush1.bf16.msra.mxu0 0
    %308 = vmatprep.subr.bf16.mxu0 0
    %309 = vmatpush1.bf16.msra.mxu0 0
    %310 = vmatprep.subr.bf16.mxu0 0
    %311 = vmatpush1.bf16.msra.mxu0 0
    %312 = vmatprep.subr.bf16.mxu0 0
    %313 = vmatpush1.bf16.msra.mxu0 0
    %314 = vmatprep.subr.bf16.mxu0 0
    %315 = vmatpush1.bf16.msra.mxu0 0
    %316 = vmatprep.subr.bf16.mxu0 0
    %317 = vmatpush1.bf16.msra.mxu0 0
    %318 = vmatprep.subr.bf16.mxu0 0
    %319 = vmatpush1.bf16.msra.mxu0 0
    %320 = vmatprep.subr.bf16.mxu0 0
    %321 = vmatpush1.bf16.msra.mxu0 0
    %322 = vmatprep.mubr.bf16.mxu0 0
    %323 = vmatmul.mubr.bf16.gmra.mrb[0].mxu0 %v288
    %v324 = vpop.f32.mrb[0].mxu0
    %v325 = vadd.f32 %v273, %v324
    %v326 = vpop.f32.mrb[0].mxu0
    %v327 = vpop.f32.mrb[0].mxu0
    %v328 = vadd.f32 %v273, %v327
    %v329 = vpop.f32.mrb[0].mxu0
    %330 = vdwg.mxu0
    %v331 = vld [vmem:[%s6] sm:$0xf]
    %v332 = vld [vmem:[%s6 + $0x4] sm:$0xf]
    %v333 = vld [vmem:[%s6 + $0x8] sm:$0xf]
    %v334 = vld [vmem:[%s6 + $0xc] sm:$0xf]
    %v335 = vld [vmem:[#allocation8] sm:$0x1]
    %v337 = vlaneseq
    %v338 = vshrl.u32 %v337, 7
    %v339 = vsub.s32 0, %v338
    %v340 = vrot.slane %v335, %v339
    %v346 = vunpack.c.l.b16 %v331
    %v347 = vunpack.c.l.b16 %v332
    %v348 = vunpack.c.l.b16 %v333
    %v349 = vunpack.c.l.b16 %v334
    %v350 = vpack.c.b16 %v347, %v346
    %v351 = vpack.c.b16 %v349, %v348
    %354 = vmatprep.subr.bf16.mxu0 0
    %355 = vmatpush1.bf16.msra.mxu0 %v350
    %356 = vmatprep.subr.bf16.mxu0 0
    %357 = vmatpush1.bf16.msra.mxu0 %v351
    %358 = vmatprep.subr.bf16.mxu0 0
    %359 = vmatpush1.bf16.msra.mxu0 0
    %360 = vmatprep.subr.bf16.mxu0 0
    %361 = vmatpush1.bf16.msra.mxu0 0
    %362 = vmatprep.subr.bf16.mxu0 0
    %363 = vmatpush1.bf16.msra.mxu0 0
    %364 = vmatprep.subr.bf16.mxu0 0
    %365 = vmatpush1.bf16.msra.mxu0 0
    %366 = vmatprep.subr.bf16.mxu0 0
    %367 = vmatpush1.bf16.msra.mxu0 0
    %368 = vmatprep.subr.bf16.mxu0 0
    %369 = vmatpush1.bf16.msra.mxu0 0
    %370 = vmatprep.subr.bf16.mxu0 0
    %371 = vmatpush1.bf16.msra.mxu0 0
    %372 = vmatprep.subr.bf16.mxu0 0
    %373 = vmatpush1.bf16.msra.mxu0 0
    %374 = vmatprep.subr.bf16.mxu0 0
    %375 = vmatpush1.bf16.msra.mxu0 0
    %376 = vmatprep.subr.bf16.mxu0 0
    %377 = vmatpush1.bf16.msra.mxu0 0
    %378 = vmatprep.subr.bf16.mxu0 0
    %379 = vmatpush1.bf16.msra.mxu0 0
    %380 = vmatprep.subr.bf16.mxu0 0
    %381 = vmatpush1.bf16.msra.mxu0 0
    %382 = vmatprep.subr.bf16.mxu0 0
    %383 = vmatpush1.bf16.msra.mxu0 0
    %384 = vmatprep.subr.bf16.mxu0 0
    %385 = vmatpush1.bf16.msra.mxu0 0
    %386 = vmatprep.mubr.bf16.mxu0 0
    %387 = vmatmul.mubr.bf16.gmra.mrb[0].mxu0 %v288
    %v388 = vpop.f32.mrb[0].mxu0
    %v389 = vadd.f32 %v340, %v388
    %v390 = vpop.f32.mrb[0].mxu0
    %v391 = vpop.f32.mrb[0].mxu0
    %v392 = vadd.f32 %v340, %v391
    %v393 = vpop.f32.mrb[0].mxu0
    %394 = vdwg.mxu0
    %v395 = vpack.c.bf16 %v258, %v258
    %v396 = vpack.c.bf16 %v261, %v261
    %v397 = vpack.c.bf16 %v325, %v325
    %v398 = vpack.c.bf16 %v328, %v328
    %v399 = vpack.c.bf16 %v389, %v389
    %v400 = vpack.c.bf16 %v392, %v392
    %vm401 = vcmask 64512
    %v403 = vsel %vm401, %v395, 0
    %v406 = vsel %vm401, %v397, 0
    %408 = vmatprep.subr.bf16.mxu0 0
    %409 = vmatpush1.bf16.xpose.msra.mxu0 %v406
    %410 = vmatprep.subr.bf16.mxu0 0
    %411 = vmatpush1.bf16.xpose.msra.mxu0 0
    %412 = vmatprep.subr.bf16.mxu0 0
    %413 = vmatpush1.bf16.xpose.msra.mxu0 0
    %414 = vmatprep.subr.bf16.mxu0 0
    %415 = vmatpush1.bf16.xpose.msra.mxu0 0
    %416 = vmatprep.subr.bf16.mxu0 0
    %417 = vmatpush1.bf16.xpose.msra.mxu0 0
    %418 = vmatprep.subr.bf16.mxu0 0
    %419 = vmatpush1.bf16.xpose.msra.mxu0 0
    %420 = vmatprep.subr.bf16.mxu0 0
    %421 = vmatpush1.bf16.xpose.msra.mxu0 0
    %422 = vmatprep.subr.bf16.mxu0 0
    %423 = vmatpush1.bf16.xpose.msra.mxu0 0
    %424 = vmatprep.subr.bf16.mxu0 0
    %425 = vmatpush1.bf16.xpose.msra.mxu0 0
    %426 = vmatprep.subr.bf16.mxu0 0
    %427 = vmatpush1.bf16.xpose.msra.mxu0 0
    %428 = vmatprep.subr.bf16.mxu0 0
    %429 = vmatpush1.bf16.xpose.msra.mxu0 0
    %430 = vmatprep.subr.bf16.mxu0 0
    %431 = vmatpush1.bf16.xpose.msra.mxu0 0
    %432 = vmatprep.subr.bf16.mxu0 0
    %433 = vmatpush1.bf16.xpose.msra.mxu0 0
    %434 = vmatprep.subr.bf16.mxu0 0
    %435 = vmatpush1.bf16.xpose.msra.mxu0 0
    %436 = vmatprep.subr.bf16.mxu0 0
    %437 = vmatpush1.bf16.xpose.msra.mxu0 0
    %438 = vmatprep.subr.bf16.mxu0 0
    %439 = vmatpush1.bf16.xpose.msra.mxu0 0
    %440 = vmatprep.mubr.bf16.mxu0 0
    %441 = vmatmul.mubr.bf16.gmra.mrb[0].mxu0 %v403
    %v442 = vpop.f32.mrb[0].mxu0
    %v443 = vadd.f32 0.0, %v442
    %v444 = vpop.f32.mrb[0].mxu0
    %v445 = vpop.f32.mrb[0].mxu0
    %v446 = vpop.f32.mrb[0].mxu0
    %447 = vdwg.mxu0
    %v449 = vsel %vm401, %v396, 0
    %v452 = vsel %vm401, %v398, 0
    %454 = vmatprep.subr.bf16.mxu0 0
    %455 = vmatpush1.bf16.xpose.msra.mxu0 %v452
    %456 = vmatprep.subr.bf16.mxu0 0
    %457 = vmatpush1.bf16.xpose.msra.mxu0 0
    %458 = vmatprep.subr.bf16.mxu0 0
    %459 = vmatpush1.bf16.xpose.msra.mxu0 0
    %460 = vmatprep.subr.bf16.mxu0 0
    %461 = vmatpush1.bf16.xpose.msra.mxu0 0
    %462 = vmatprep.subr.bf16.mxu0 0
    %463 = vmatpush1.bf16.xpose.msra.mxu0 0
    %464 = vmatprep.subr.bf16.mxu0 0
    %465 = vmatpush1.bf16.xpose.msra.mxu0 0
    %466 = vmatprep.subr.bf16.mxu0 0
    %467 = vmatpush1.bf16.xpose.msra.mxu0 0
    %468 = vmatprep.subr.bf16.mxu0 0
    %469 = vmatpush1.bf16.xpose.msra.mxu0 0
    %470 = vmatprep.subr.bf16.mxu0 0
    %471 = vmatpush1.bf16.xpose.msra.mxu0 0
    %472 = vmatprep.subr.bf16.mxu0 0
    %473 = vmatpush1.bf16.xpose.msra.mxu0 0
    %474 = vmatprep.subr.bf16.mxu0 0
    %475 = vmatpush1.bf16.xpose.msra.mxu0 0
    %476 = vmatprep.subr.bf16.mxu0 0
    %477 = vmatpush1.bf16.xpose.msra.mxu0 0
    %478 = vmatprep.subr.bf16.mxu0 0
    %479 = vmatpush1.bf16.xpose.msra.mxu0 0
    %480 = vmatprep.subr.bf16.mxu0 0
    %481 = vmatpush1.bf16.xpose.msra.mxu0 0
    %482 = vmatprep.subr.bf16.mxu0 0
    %483 = vmatpush1.bf16.xpose.msra.mxu0 0
    %484 = vmatprep.subr.bf16.mxu0 0
    %485 = vmatpush1.bf16.xpose.msra.mxu0 0
    %486 = vmatprep.mubr.bf16.mxu0 0
    %487 = vmatmul.mubr.bf16.gmra.mrb[0].mxu0 %v449
    %v488 = vpop.f32.mrb[0].mxu0
    %v489 = vadd.f32 0.0, %v488
    %v490 = vpop.f32.mrb[0].mxu0
    %v491 = vpop.f32.mrb[0].mxu0
    %v492 = vpop.f32.mrb[0].mxu0
    %493 = vdwg.mxu0
    %v494 = vmul.f32 %v443, 0.35355338
    %v495 = vmul.f32 %v489, 0.35355338
    %v496 = vsel %vm401, %v494, -inf
    %497 = vmax.xlane.f32.xlu0 %v496
    %v498 = vpop.xlane.xlu0 %497
    %v499 = vsel %vm401, %v495, -inf
    %500 = vmax.xlane.f32.xlu0 %v499
    %v501 = vpop.xlane.xlu0 %500
    %v502 = vsub.f32 %v494, %v498
    %v503 = vsub.f32 %v495, %v501
    %v504 = vmul.f32 %v502, 1.442695
    %v505 = vpow.pop %v504
    %v506 = vmul.f32 %v503, 1.442695
    %v507 = vpow.pop %v506
    %v508 = vsel %vm401, %v505, 0.0
    %509 = vadd.xlane.f32.xlu0 %v508
    %v510 = vpop.xlane.xlu0 %509
    %v511 = vsel %vm401, %v507, 0.0
    %512 = vadd.xlane.f32.xlu0 %v511
    %v513 = vpop.xlane.xlu0 %512
    %v514 = vrcp.pop %v510
    %v515 = vrcp.pop %v513
    %v516 = vmul.f32 %v505, %v514
    %v517 = vmul.f32 %v507, %v515
    %v518 = vpack.c.bf16 %v516, %v516
    %v519 = vpack.c.bf16 %v517, %v517
    %v521 = vsel %vm401, %v518, 0
    %vm523 = vcmask 1043456
    %v525 = vsel %vm523, %v399, 0
    %527 = vmatprep.subr.bf16.mxu0 0
    %528 = vmatpush1.bf16.msra.mxu0 %v525
    %529 = vmatprep.subr.bf16.mxu0 0
    %530 = vmatpush1.bf16.msra.mxu0 0
    %531 = vmatprep.subr.bf16.mxu0 0
    %532 = vmatpush1.bf16.msra.mxu0 0
    %533 = vmatprep.subr.bf16.mxu0 0
    %534 = vmatpush1.bf16.msra.mxu0 0
    %535 = vmatprep.subr.bf16.mxu0 0
    %536 = vmatpush1.bf16.msra.mxu0 0
    %537 = vmatprep.subr.bf16.mxu0 0
    %538 = vmatpush1.bf16.msra.mxu0 0
    %539 = vmatprep.subr.bf16.mxu0 0
    %540 = vmatpush1.bf16.msra.mxu0 0
    %541 = vmatprep.subr.bf16.mxu0 0
    %542 = vmatpush1.bf16.msra.mxu0 0
    %543 = vmatprep.subr.bf16.mxu0 0
    %544 = vmatpush1.bf16.msra.mxu0 0
    %545 = vmatprep.subr.bf16.mxu0 0
    %546 = vmatpush1.bf16.msra.mxu0 0
    %547 = vmatprep.subr.bf16.mxu0 0
    %548 = vmatpush1.bf16.msra.mxu0 0
    %549 = vmatprep.subr.bf16.mxu0 0
    %550 = vmatpush1.bf16.msra.mxu0 0
    %551 = vmatprep.subr.bf16.mxu0 0
    %552 = vmatpush1.bf16.msra.mxu0 0
    %553 = vmatprep.subr.bf16.mxu0 0
    %554 = vmatpush1.bf16.msra.mxu0 0
    %555 = vmatprep.subr.bf16.mxu0 0
    %556 = vmatpush1.bf16.msra.mxu0 0
    %557 = vmatprep.subr.bf16.mxu0 0
    %558 = vmatpush1.bf16.msra.mxu0 0
    %559 = vmatprep.mubr.bf16.mxu0 0
    %560 = vmatmul.mubr.bf16.gmra.mrb[0].mxu0 %v521
    %v561 = vpop.f32.mrb[0].mxu0
    %v562 = vadd.f32 0.0, %v561
    %v563 = vpop.f32.mrb[0].mxu0
    %v564 = vpop.f32.mrb[0].mxu0
    %v565 = vpop.f32.mrb[0].mxu0
    %566 = vdwg.mxu0
    %v568 = vsel %vm401, %v519, 0
    %v571 = vsel %vm523, %v400, 0
    %573 = vmatprep.subr.bf16.mxu0 0
    %574 = vmatpush1.bf16.msra.mxu0 %v571
    %575 = vmatprep.subr.bf16.mxu0 0
    %576 = vmatpush1.bf16.msra.mxu0 0
    %577 = vmatprep.subr.bf16.mxu0 0
    %578 = vmatpush1.bf16.msra.mxu0 0
    %579 = vmatprep.subr.bf16.mxu0 0
    %580 = vmatpush1.bf16.msra.mxu0 0
    %581 = vmatprep.subr.bf16.mxu0 0
    %582 = vmatpush1.bf16.msra.mxu0 0
    %583 = vmatprep.subr.bf16.mxu0 0
    %584 = vmatpush1.bf16.msra.mxu0 0
    %585 = vmatprep.subr.bf16.mxu0 0
    %586 = vmatpush1.bf16.msra.mxu0 0
    %587 = vmatprep.subr.bf16.mxu0 0
    %588 = vmatpush1.bf16.msra.mxu0 0
    %589 = vmatprep.subr.bf16.mxu0 0
    %590 = vmatpush1.bf16.msra.mxu0 0
    %591 = vmatprep.subr.bf16.mxu0 0
    %592 = vmatpush1.bf16.msra.mxu0 0
    %593 = vmatprep.subr.bf16.mxu0 0
    %594 = vmatpush1.bf16.msra.mxu0 0
    %595 = vmatprep.subr.bf16.mxu0 0
    %596 = vmatpush1.bf16.msra.mxu0 0
    %597 = vmatprep.subr.bf16.mxu0 0
    %598 = vmatpush1.bf16.msra.mxu0 0
    %599 = vmatprep.subr.bf16.mxu0 0
    %600 = vmatpush1.bf16.msra.mxu0 0
    %601 = vmatprep.subr.bf16.mxu0 0
    %602 = vmatpush1.bf16.msra.mxu0 0
    %603 = vmatprep.subr.bf16.mxu0 0
    %604 = vmatpush1.bf16.msra.mxu0 0
    %605 = vmatprep.mubr.bf16.mxu0 0
    %606 = vmatmul.mubr.bf16.gmra.mrb[0].mxu0 %v568
    %v607 = vpop.f32.mrb[0].mxu0
    %v608 = vadd.f32 0.0, %v607
    %v609 = vpop.f32.mrb[0].mxu0
    %v610 = vpop.f32.mrb[0].mxu0
    %v611 = vpop.f32.mrb[0].mxu0
    %612 = vdwg.mxu0
    %613 = vst.msk [vmem:[#allocation2] sm:$0xff] %vm401, %v562
    %614 = vst.msk [vmem:[#allocation2 + $0x8] sm:$0xff] %vm401, %v608
    %616 = vrot.lane.b32.xlu0 %v395, 120
    %v617 = vpop.permute.xlu0 %616
    %619 = vrot.lane.b32.xlu0 %v397, 120
    %v620 = vpop.permute.xlu0 %619
    %v622 = vsel %vm401, %v617, 0
    %v625 = vsel %vm401, %v620, 0
    %627 = vmatprep.subr.bf16.mxu0 0
    %628 = vmatpush1.bf16.xpose.msra.mxu0 %v625
    %629 = vmatprep.subr.bf16.mxu0 0
    %630 = vmatpush1.bf16.xpose.msra.mxu0 0
    %631 = vmatprep.subr.bf16.mxu0 0
    %632 = vmatpush1.bf16.xpose.msra.mxu0 0
    %633 = vmatprep.subr.bf16.mxu0 0
    %634 = vmatpush1.bf16.xpose.msra.mxu0 0
    %635 = vmatprep.subr.bf16.mxu0 0
    %636 = vmatpush1.bf16.xpose.msra.mxu0 0
    %637 = vmatprep.subr.bf16.mxu0 0
    %638 = vmatpush1.bf16.xpose.msra.mxu0 0
    %639 = vmatprep.subr.bf16.mxu0 0
    %640 = vmatpush1.bf16.xpose.msra.mxu0 0
    %641 = vmatprep.subr.bf16.mxu0 0
    %642 = vmatpush1.bf16.xpose.msra.mxu0 0
    %643 = vmatprep.subr.bf16.mxu0 0
    %644 = vmatpush1.bf16.xpose.msra.mxu0 0
    %645 = vmatprep.subr.bf16.mxu0 0
    %646 = vmatpush1.bf16.xpose.msra.mxu0 0
    %647 = vmatprep.subr.bf16.mxu0 0
    %648 = vmatpush1.bf16.xpose.msra.mxu0 0
    %649 = vmatprep.subr.bf16.mxu0 0
    %650 = vmatpush1.bf16.xpose.msra.mxu0 0
    %651 = vmatprep.subr.bf16.mxu0 0
    %652 = vmatpush1.bf16.xpose.msra.mxu0 0
    %653 = vmatprep.subr.bf16.mxu0 0
    %654 = vmatpush1.bf16.xpose.msra.mxu0 0
    %655 = vmatprep.subr.bf16.mxu0 0
    %656 = vmatpush1.bf16.xpose.msra.mxu0 0
    %657 = vmatprep.subr.bf16.mxu0 0
    %658 = vmatpush1.bf16.xpose.msra.mxu0 0
    %659 = vmatprep.mubr.bf16.mxu0 0
    %660 = vmatmul.mubr.bf16.gmra.mrb[0].mxu0 %v622
    %v661 = vpop.f32.mrb[0].mxu0
    %v662 = vadd.f32 0.0, %v661
    %v663 = vpop.f32.mrb[0].mxu0
    %v664 = vpop.f32.mrb[0].mxu0
    %v665 = vpop.f32.mrb[0].mxu0
    %666 = vdwg.mxu0
    %668 = vrot.lane.b32.xlu0 %v396, 120
    %v669 = vpop.permute.xlu0 %668
    %671 = vrot.lane.b32.xlu0 %v398, 120
    %v672 = vpop.permute.xlu0 %671
    %v674 = vsel %vm401, %v669, 0
    %v677 = vsel %vm401, %v672, 0
    %679 = vmatprep.subr.bf16.mxu0 0
    %680 = vmatpush1.bf16.xpose.msra.mxu0 %v677
    %681 = vmatprep.subr.bf16.mxu0 0
    %682 = vmatpush1.bf16.xpose.msra.mxu0 0
    %683 = vmatprep.subr.bf16.mxu0 0
    %684 = vmatpush1.bf16.xpose.msra.mxu0 0
    %685 = vmatprep.subr.bf16.mxu0 0
    %686 = vmatpush1.bf16.xpose.msra.mxu0 0
    %687 = vmatprep.subr.bf16.mxu0 0
    %688 = vmatpush1.bf16.xpose.msra.mxu0 0
    %689 = vmatprep.subr.bf16.mxu0 0
    %690 = vmatpush1.bf16.xpose.msra.mxu0 0
    %691 = vmatprep.subr.bf16.mxu0 0
    %692 = vmatpush1.bf16.xpose.msra.mxu0 0
    %693 = vmatprep.subr.bf16.mxu0 0
    %694 = vmatpush1.bf16.xpose.msra.mxu0 0
    %695 = vmatprep.subr.bf16.mxu0 0
    %696 = vmatpush1.bf16.xpose.msra.mxu0 0
    %697 = vmatprep.subr.bf16.mxu0 0
    %698 = vmatpush1.bf16.xpose.msra.mxu0 0
    %699 = vmatprep.subr.bf16.mxu0 0
    %700 = vmatpush1.bf16.xpose.msra.mxu0 0
    %701 = vmatprep.subr.bf16.mxu0 0
    %702 = vmatpush1.bf16.xpose.msra.mxu0 0
    %703 = vmatprep.subr.bf16.mxu0 0
    %704 = vmatpush1.bf16.xpose.msra.mxu0 0
    %705 = vmatprep.subr.bf16.mxu0 0
    %706 = vmatpush1.bf16.xpose.msra.mxu0 0
    %707 = vmatprep.subr.bf16.mxu0 0
    %708 = vmatpush1.bf16.xpose.msra.mxu0 0
    %709 = vmatprep.subr.bf16.mxu0 0
    %710 = vmatpush1.bf16.xpose.msra.mxu0 0
    %711 = vmatprep.mubr.bf16.mxu0 0
    %712 = vmatmul.mubr.bf16.gmra.mrb[0].mxu0 %v674
    %v713 = vpop.f32.mrb[0].mxu0
    %v714 = vadd.f32 0.0, %v713
    %v715 = vpop.f32.mrb[0].mxu0
    %v716 = vpop.f32.mrb[0].mxu0
    %v717 = vpop.f32.mrb[0].mxu0
    %718 = vdwg.mxu0
    %v719 = vmul.f32 %v662, 0.35355338
    %v720 = vmul.f32 %v714, 0.35355338
    %v721 = vsel %vm401, %v719, -inf
    %722 = vmax.xlane.f32.xlu0 %v721
    %v723 = vpop.xlane.xlu0 %722
    %v724 = vsel %vm401, %v720, -inf
    %725 = vmax.xlane.f32.xlu0 %v724
    %v726 = vpop.xlane.xlu0 %725
    %v727 = vsub.f32 %v719, %v723
    %v728 = vsub.f32 %v720, %v726
    %v729 = vmul.f32 %v727, 1.442695
    %v730 = vpow.pop %v729
    %v731 = vmul.f32 %v728, 1.442695
    %v732 = vpow.pop %v731
    %v733 = vsel %vm401, %v730, 0.0
    %734 = vadd.xlane.f32.xlu0 %v733
    %v735 = vpop.xlane.xlu0 %734
    %v736 = vsel %vm401, %v732, 0.0
    %737 = vadd.xlane.f32.xlu0 %v736
    %v738 = vpop.xlane.xlu0 %737
    %v739 = vrcp.pop %v735
    %v740 = vrcp.pop %v738
    %v741 = vmul.f32 %v730, %v739
    %v742 = vmul.f32 %v732, %v740
    %v743 = vpack.c.bf16 %v741, %v741
    %v744 = vpack.c.bf16 %v742, %v742
    %746 = vrot.lane.b32.xlu0 %v399, 120
    %v747 = vpop.permute.xlu0 %746
    %v749 = vsel %vm401, %v743, 0
    %v752 = vsel %vm523, %v747, 0
    %754 = vmatprep.subr.bf16.mxu0 0
    %755 = vmatpush1.bf16.msra.mxu0 %v752
    %756 = vmatprep.subr.bf16.mxu0 0
    %757 = vmatpush1.bf16.msra.mxu0 0
    %758 = vmatprep.subr.bf16.mxu0 0
    %759 = vmatpush1.bf16.msra.mxu0 0
    %760 = vmatprep.subr.bf16.mxu0 0
    %761 = vmatpush1.bf16.msra.mxu0 0
    %762 = vmatprep.subr.bf16.mxu0 0
    %763 = vmatpush1.bf16.msra.mxu0 0
    %764 = vmatprep.subr.bf16.mxu0 0
    %765 = vmatpush1.bf16.msra.mxu0 0
    %766 = vmatprep.subr.bf16.mxu0 0
    %767 = vmatpush1.bf16.msra.mxu0 0
    %768 = vmatprep.subr.bf16.mxu0 0
    %769 = vmatpush1.bf16.msra.mxu0 0
    %770 = vmatprep.subr.bf16.mxu0 0
    %771 = vmatpush1.bf16.msra.mxu0 0
    %772 = vmatprep.subr.bf16.mxu0 0
    %773 = vmatpush1.bf16.msra.mxu0 0
    %774 = vmatprep.subr.bf16.mxu0 0
    %775 = vmatpush1.bf16.msra.mxu0 0
    %776 = vmatprep.subr.bf16.mxu0 0
    %777 = vmatpush1.bf16.msra.mxu0 0
    %778 = vmatprep.subr.bf16.mxu0 0
    %779 = vmatpush1.bf16.msra.mxu0 0
    %780 = vmatprep.subr.bf16.mxu0 0
    %781 = vmatpush1.bf16.msra.mxu0 0
    %782 = vmatprep.subr.bf16.mxu0 0
    %783 = vmatpush1.bf16.msra.mxu0 0
    %784 = vmatprep.subr.bf16.mxu0 0
    %785 = vmatpush1.bf16.msra.mxu0 0
    %786 = vmatprep.mubr.bf16.mxu0 0
    %787 = vmatmul.mubr.bf16.gmra.mrb[0].mxu0 %v749
    %v788 = vpop.f32.mrb[0].mxu0
    %v789 = vadd.f32 0.0, %v788
    %v790 = vpop.f32.mrb[0].mxu0
    %v791 = vpop.f32.mrb[0].mxu0
    %v792 = vpop.f32.mrb[0].mxu0
    %793 = vdwg.mxu0
    %795 = vrot.lane.b32.xlu0 %v400, 120
    %v796 = vpop.permute.xlu0 %795
    %v798 = vsel %vm401, %v744, 0
    %v801 = vsel %vm523, %v796, 0
    %803 = vmatprep.subr.bf16.mxu0 0
    %804 = vmatpush1.bf16.msra.mxu0 %v801
    %805 = vmatprep.subr.bf16.mxu0 0
    %806 = vmatpush1.bf16.msra.mxu0 0
    %807 = vmatprep.subr.bf16.mxu0 0
    %808 = vmatpush1.bf16.msra.mxu0 0
    %809 = vmatprep.subr.bf16.mxu0 0
    %810 = vmatpush1.bf16.msra.mxu0 0
    %811 = vmatprep.subr.bf16.mxu0 0
    %812 = vmatpush1.bf16.msra.mxu0 0
    %813 = vmatprep.subr.bf16.mxu0 0
    %814 = vmatpush1.bf16.msra.mxu0 0
    %815 = vmatprep.subr.bf16.mxu0 0
    %816 = vmatpush1.bf16.msra.mxu0 0
    %817 = vmatprep.subr.bf16.mxu0 0
    %818 = vmatpush1.bf16.msra.mxu0 0
    %819 = vmatprep.subr.bf16.mxu0 0
    %820 = vmatpush1.bf16.msra.mxu0 0
    %821 = vmatprep.subr.bf16.mxu0 0
    %822 = vmatpush1.bf16.msra.mxu0 0
    %823 = vmatprep.subr.bf16.mxu0 0
    %824 = vmatpush1.bf16.msra.mxu0 0
    %825 = vmatprep.subr.bf16.mxu0 0
    %826 = vmatpush1.bf16.msra.mxu0 0
    %827 = vmatprep.subr.bf16.mxu0 0
    %828 = vmatpush1.bf16.msra.mxu0 0
    %829 = vmatprep.subr.bf16.mxu0 0
    %830 = vmatpush1.bf16.msra.mxu0 0
    %831 = vmatprep.subr.bf16.mxu0 0
    %832 = vmatpush1.bf16.msra.mxu0 0
    %833 = vmatprep.subr.bf16.mxu0 0
    %834 = vmatpush1.bf16.msra.mxu0 0
    %835 = vmatprep.mubr.bf16.mxu0 0
    %836 = vmatmul.mubr.bf16.gmra.mrb[0].mxu0 %v798
    %v837 = vpop.f32.mrb[0].mxu0
    %v838 = vadd.f32 0.0, %v837
    %v839 = vpop.f32.mrb[0].mxu0
    %v840 = vpop.f32.mrb[0].mxu0
    %v841 = vpop.f32.mrb[0].mxu0
    %842 = vdwg.mxu0
    %845 = vrot.lane.b32.xlu0 %v789, 8
    %v846 = vpop.permute.xlu0 %845
    %847 = vrot.lane.b32.xlu0 %v838, 8
    %v848 = vpop.permute.xlu0 %847
    %vm851 = vcmask 130112
    %852 = vst.msk [vmem:[#allocation2] sm:$0xff] %vm851, %v846
    %853 = vst.msk [vmem:[#allocation2 + $0x8] sm:$0xff] %vm851, %v848
    %854 = vrot.lane.b32.xlu0 %v395, 112
    %v855 = vpop.permute.xlu0 %854
    %856 = vrot.lane.b32.xlu0 %v397, 112
    %v857 = vpop.permute.xlu0 %856
    %v859 = vsel %vm401, %v855, 0
    %v862 = vsel %vm401, %v857, 0
    %864 = vmatprep.subr.bf16.mxu0 0
    %865 = vmatpush1.bf16.xpose.msra.mxu0 %v862
    %866 = vmatprep.subr.bf16.mxu0 0
    %867 = vmatpush1.bf16.xpose.msra.mxu0 0
    %868 = vmatprep.subr.bf16.mxu0 0
    %869 = vmatpush1.bf16.xpose.msra.mxu0 0
    %870 = vmatprep.subr.bf16.mxu0 0
    %871 = vmatpush1.bf16.xpose.msra.mxu0 0
    %872 = vmatprep.subr.bf16.mxu0 0
    %873 = vmatpush1.bf16.xpose.msra.mxu0 0
    %874 = vmatprep.subr.bf16.mxu0 0
    %875 = vmatpush1.bf16.xpose.msra.mxu0 0
    %876 = vmatprep.subr.bf16.mxu0 0
    %877 = vmatpush1.bf16.xpose.msra.mxu0 0
    %878 = vmatprep.subr.bf16.mxu0 0
    %879 = vmatpush1.bf16.xpose.msra.mxu0 0
    %880 = vmatprep.subr.bf16.mxu0 0
    %881 = vmatpush1.bf16.xpose.msra.mxu0 0
    %882 = vmatprep.subr.bf16.mxu0 0
    %883 = vmatpush1.bf16.xpose.msra.mxu0 0
    %884 = vmatprep.subr.bf16.mxu0 0
    %885 = vmatpush1.bf16.xpose.msra.mxu0 0
    %886 = vmatprep.subr.bf16.mxu0 0
    %887 = vmatpush1.bf16.xpose.msra.mxu0 0
    %888 = vmatprep.subr.bf16.mxu0 0
    %889 = vmatpush1.bf16.xpose.msra.mxu0 0
    %890 = vmatprep.subr.bf16.mxu0 0
    %891 = vmatpush1.bf16.xpose.msra.mxu0 0
    %892 = vmatprep.subr.bf16.mxu0 0
    %893 = vmatpush1.bf16.xpose.msra.mxu0 0
    %894 = vmatprep.subr.bf16.mxu0 0
    %895 = vmatpush1.bf16.xpose.msra.mxu0 0
    %896 = vmatprep.mubr.bf16.mxu0 0
    %897 = vmatmul.mubr.bf16.gmra.mrb[0].mxu0 %v859
    %v898 = vpop.f32.mrb[0].mxu0
    %v899 = vadd.f32 0.0, %v898
    %v900 = vpop.f32.mrb[0].mxu0
    %v901 = vpop.f32.mrb[0].mxu0
    %v902 = vpop.f32.mrb[0].mxu0
    %903 = vdwg.mxu0
    %904 = vrot.lane.b32.xlu0 %v396, 112
    %v905 = vpop.permute.xlu0 %904
    %906 = vrot.lane.b32.xlu0 %v398, 112
    %v907 = vpop.permute.xlu0 %906
    %v909 = vsel %vm401, %v905, 0
    %v912 = vsel %vm401, %v907, 0
    %914 = vmatprep.subr.bf16.mxu0 0
    %915 = vmatpush1.bf16.xpose.msra.mxu0 %v912
    %916 = vmatprep.subr.bf16.mxu0 0
    %917 = vmatpush1.bf16.xpose.msra.mxu0 0
    %918 = vmatprep.subr.bf16.mxu0 0
    %919 = vmatpush1.bf16.xpose.msra.mxu0 0
    %920 = vmatprep.subr.bf16.mxu0 0
    %921 = vmatpush1.bf16.xpose.msra.mxu0 0
    %922 = vmatprep.subr.bf16.mxu0 0
    %923 = vmatpush1.bf16.xpose.msra.mxu0 0
    %924 = vmatprep.subr.bf16.mxu0 0
    %925 = vmatpush1.bf16.xpose.msra.mxu0 0
    %926 = vmatprep.subr.bf16.mxu0 0
    %927 = vmatpush1.bf16.xpose.msra.mxu0 0
    %928 = vmatprep.subr.bf16.mxu0 0
    %929 = vmatpush1.bf16.xpose.msra.mxu0 0
    %930 = vmatprep.subr.bf16.mxu0 0
    %931 = vmatpush1.bf16.xpose.msra.mxu0 0
    %932 = vmatprep.subr.bf16.mxu0 0
    %933 = vmatpush1.bf16.xpose.msra.mxu0 0
    %934 = vmatprep.subr.bf16.mxu0 0
    %935 = vmatpush1.bf16.xpose.msra.mxu0 0
    %936 = vmatprep.subr.bf16.mxu0 0
    %937 = vmatpush1.bf16.xpose.msra.mxu0 0
    %938 = vmatprep.subr.bf16.mxu0 0
    %939 = vmatpush1.bf16.xpose.msra.mxu0 0
    %940 = vmatprep.subr.bf16.mxu0 0
    %941 = vmatpush1.bf16.xpose.msra.mxu0 0
    %942 = vmatprep.subr.bf16.mxu0 0
    %943 = vmatpush1.bf16.xpose.msra.mxu0 0
    %944 = vmatprep.subr.bf16.mxu0 0
    %945 = vmatpush1.bf16.xpose.msra.mxu0 0
    %946 = vmatprep.mubr.bf16.mxu0 0
    %947 = vmatmul.mubr.bf16.gmra.mrb[0].mxu0 %v909
    %v948 = vpop.f32.mrb[0].mxu0
    %v949 = vadd.f32 0.0, %v948
    %v950 = vpop.f32.mrb[0].mxu0
    %v951 = vpop.f32.mrb[0].mxu0
    %v952 = vpop.f32.mrb[0].mxu0
    %953 = vdwg.mxu0
    %v954 = vmul.f32 %v899, 0.35355338
    %v955 = vmul.f32 %v949, 0.35355338
    %v956 = vsel %vm401, %v954, -inf
    %957 = vmax.xlane.f32.xlu0 %v956
    %v958 = vpop.xlane.xlu0 %957
    %v959 = vsel %vm401, %v955, -inf
    %960 = vmax.xlane.f32.xlu0 %v959
    %v961 = vpop.xlane.xlu0 %960
    %v962 = vsub.f32 %v954, %v958
    %v963 = vsub.f32 %v955, %v961
    %v964 = vmul.f32 %v962, 1.442695
    %v965 = vpow.pop %v964
    %v966 = vmul.f32 %v963, 1.442695
    %v967 = vpow.pop %v966
    %v968 = vsel %vm401, %v965, 0.0
    %969 = vadd.xlane.f32.xlu0 %v968
    %v970 = vpop.xlane.xlu0 %969
    %v971 = vsel %vm401, %v967, 0.0
    %972 = vadd.xlane.f32.xlu0 %v971
    %v973 = vpop.xlane.xlu0 %972
    %v974 = vrcp.pop %v970
    %v975 = vrcp.pop %v973
    %v976 = vmul.f32 %v965, %v974
    %v977 = vmul.f32 %v967, %v975
    %v978 = vpack.c.bf16 %v976, %v976
    %v979 = vpack.c.bf16 %v977, %v977
    %980 = vrot.lane.b32.xlu0 %v399, 112
    %v981 = vpop.permute.xlu0 %980
    %v983 = vsel %vm401, %v978, 0
    %v986 = vsel %vm523, %v981, 0
    %988 = vmatprep.subr.bf16.mxu0 0
    %989 = vmatpush1.bf16.msra.mxu0 %v986
    %990 = vmatprep.subr.bf16.mxu0 0
    %991 = vmatpush1.bf16.msra.mxu0 0
    %992 = vmatprep.subr.bf16.mxu0 0
    %993 = vmatpush1.bf16.msra.mxu0 0
    %994 = vmatprep.subr.bf16.mxu0 0
    %995 = vmatpush1.bf16.msra.mxu0 0
    %996 = vmatprep.subr.bf16.mxu0 0
    %997 = vmatpush1.bf16.msra.mxu0 0
    %998 = vmatprep.subr.bf16.mxu0 0
    %999 = vmatpush1.bf16.msra.mxu0 0
    %1000 = vmatprep.subr.bf16.mxu0 0
    %1001 = vmatpush1.bf16.msra.mxu0 0
    %1002 = vmatprep.subr.bf16.mxu0 0
    %1003 = vmatpush1.bf16.msra.mxu0 0
    %1004 = vmatprep.subr.bf16.mxu0 0
    %1005 = vmatpush1.bf16.msra.mxu0 0
    %1006 = vmatprep.subr.bf16.mxu0 0
    %1007 = vmatpush1.bf16.msra.mxu0 0
    %1008 = vmatprep.subr.bf16.mxu0 0
    %1009 = vmatpush1.bf16.msra.mxu0 0
    %1010 = vmatprep.subr.bf16.mxu0 0
    %1011 = vmatpush1.bf16.msra.mxu0 0
    %1012 = vmatprep.subr.bf16.mxu0 0
    %1013 = vmatpush1.bf16.msra.mxu0 0
    %1014 = vmatprep.subr.bf16.mxu0 0
    %1015 = vmatpush1.bf16.msra.mxu0 0
    %1016 = vmatprep.subr.bf16.mxu0 0
    %1017 = vmatpush1.bf16.msra.mxu0 0
    %1018 = vmatprep.subr.bf16.mxu0 0
    %1019 = vmatpush1.bf16.msra.mxu0 0
    %1020 = vmatprep.mubr.bf16.mxu0 0
    %1021 = vmatmul.mubr.bf16.gmra.mrb[0].mxu0 %v983
    %v1022 = vpop.f32.mrb[0].mxu0
    %v1023 = vadd.f32 0.0, %v1022
    %v1024 = vpop.f32.mrb[0].mxu0
    %v1025 = vpop.f32.mrb[0].mxu0
    %v1026 = vpop.f32.mrb[0].mxu0
    %1027 = vdwg.mxu0
    %1028 = vrot.lane.b32.xlu0 %v400, 112
    %v1029 = vpop.permute.xlu0 %1028
    %v1031 = vsel %vm401, %v979, 0
    %v1034 = vsel %vm523, %v1029, 0
    %1036 = vmatprep.subr.bf16.mxu0 0
    %1037 = vmatpush1.bf16.msra.mxu0 %v1034
    %1038 = vmatprep.subr.bf16.mxu0 0
    %1039 = vmatpush1.bf16.msra.mxu0 0
    %1040 = vmatprep.subr.bf16.mxu0 0
    %1041 = vmatpush1.bf16.msra.mxu0 0
    %1042 = vmatprep.subr.bf16.mxu0 0
    %1043 = vmatpush1.bf16.msra.mxu0 0
    %1044 = vmatprep.subr.bf16.mxu0 0
    %1045 = vmatpush1.bf16.msra.mxu0 0
    %1046 = vmatprep.subr.bf16.mxu0 0
    %1047 = vmatpush1.bf16.msra.mxu0 0
    %1048 = vmatprep.subr.bf16.mxu0 0
    %1049 = vmatpush1.bf16.msra.mxu0 0
    %1050 = vmatprep.subr.bf16.mxu0 0
    %1051 = vmatpush1.bf16.msra.mxu0 0
    %1052 = vmatprep.subr.bf16.mxu0 0
    %1053 = vmatpush1.bf16.msra.mxu0 0
    %1054 = vmatprep.subr.bf16.mxu0 0
    %1055 = vmatpush1.bf16.msra.mxu0 0
    %1056 = vmatprep.subr.bf16.mxu0 0
    %1057 = vmatpush1.bf16.msra.mxu0 0
    %1058 = vmatprep.subr.bf16.mxu0 0
    %1059 = vmatpush1.bf16.msra.mxu0 0
    %1060 = vmatprep.subr.bf16.mxu0 0
    %1061 = vmatpush1.bf16.msra.mxu0 0
    %1062 = vmatprep.subr.bf16.mxu0 0
    %1063 = vmatpush1.bf16.msra.mxu0 0
    %1064 = vmatprep.subr.bf16.mxu0 0
    %1065 = vmatpush1.bf16.msra.mxu0 0
    %1066 = vmatprep.subr.bf16.mxu0 0
    %1067 = vmatpush1.bf16.msra.mxu0 0
    %1068 = vmatprep.mubr.bf16.mxu0 0
    %1069 = vmatmul.mubr.bf16.gmra.mrb[0].mxu0 %v1031
    %v1070 = vpop.f32.mrb[0].mxu0
    %v1071 = vadd.f32 0.0, %v1070
    %v1072 = vpop.f32.mrb[0].mxu0
    %v1073 = vpop.f32.mrb[0].mxu0
    %v1074 = vpop.f32.mrb[0].mxu0
    %1075 = vdwg.mxu0
    %1078 = vrot.lane.b32.xlu0 %v1023, 16
    %v1079 = vpop.permute.xlu0 %1078
    %1080 = vrot.lane.b32.xlu0 %v1071, 16
    %v1081 = vpop.permute.xlu0 %1080
    %vm1084 = vcmask 195712
    %1085 = vst.msk [vmem:[#allocation2] sm:$0xff] %vm1084, %v1079
    %1086 = vst.msk [vmem:[#allocation2 + $0x8] sm:$0xff] %vm1084, %v1081
    %1087 = vrot.lane.b32.xlu0 %v395, 104
    %v1088 = vpop.permute.xlu0 %1087
    %1089 = vrot.lane.b32.xlu0 %v397, 104
    %v1090 = vpop.permute.xlu0 %1089
    %v1092 = vsel %vm401, %v1088, 0
    %v1095 = vsel %vm401, %v1090, 0
    %1097 = vmatprep.subr.bf16.mxu0 0
    %1098 = vmatpush1.bf16.xpose.msra.mxu0 %v1095
    %1099 = vmatprep.subr.bf16.mxu0 0
    %1100 = vmatpush1.bf16.xpose.msra.mxu0 0
    %1101 = vmatprep.subr.bf16.mxu0 0
    %1102 = vmatpush1.bf16.xpose.msra.mxu0 0
    %1103 = vmatprep.subr.bf16.mxu0 0
    %1104 = vmatpush1.bf16.xpose.msra.mxu0 0
    %1105 = vmatprep.subr.bf16.mxu0 0
    %1106 = vmatpush1.bf16.xpose.msra.mxu0 0
    %1107 = vmatprep.subr.bf16.mxu0 0
    %1108 = vmatpush1.bf16.xpose.msra.mxu0 0
    %1109 = vmatprep.subr.bf16.mxu0 0
    %1110 = vmatpush1.bf16.xpose.msra.mxu0 0
    %1111 = vmatprep.subr.bf16.mxu0 0
    %1112 = vmatpush1.bf16.xpose.msra.mxu0 0
    %1113 = vmatprep.subr.bf16.mxu0 0
    %1114 = vmatpush1.bf16.xpose.msra.mxu0 0
    %1115 = vmatprep.subr.bf16.mxu0 0
    %1116 = vmatpush1.bf16.xpose.msra.mxu0 0
    %1117 = vmatprep.subr.bf16.mxu0 0
    %1118 = vmatpush1.bf16.xpose.msra.mxu0 0
    %1119 = vmatprep.subr.bf16.mxu0 0
    %1120 = vmatpush1.bf16.xpose.msra.mxu0 0
    %1121 = vmatprep.subr.bf16.mxu0 0
    %1122 = vmatpush1.bf16.xpose.msra.mxu0 0
    %1123 = vmatprep.subr.bf16.mxu0 0
    %1124 = vmatpush1.bf16.xpose.msra.mxu0 0
    %1125 = vmatprep.subr.bf16.mxu0 0
    %1126 = vmatpush1.bf16.xpose.msra.mxu0 0
    %1127 = vmatprep.subr.bf16.mxu0 0
    %1128 = vmatpush1.bf16.xpose.msra.mxu0 0
    %1129 = vmatprep.mubr.bf16.mxu0 0
    %1130 = vmatmul.mubr.bf16.gmra.mrb[0].mxu0 %v1092
    %v1131 = vpop.f32.mrb[0].mxu0
    %v1132 = vadd.f32 0.0, %v1131
    %v1133 = vpop.f32.mrb[0].mxu0
    %v1134 = vpop.f32.mrb[0].mxu0
    %v1135 = vpop.f32.mrb[0].mxu0
    %1136 = vdwg.mxu0
    %1137 = vrot.lane.b32.xlu0 %v396, 104
    %v1138 = vpop.permute.xlu0 %1137
    %1139 = vrot.lane.b32.xlu0 %v398, 104
    %v1140 = vpop.permute.xlu0 %1139
    %v1142 = vsel %vm401, %v1138, 0
    %v1145 = vsel %vm401, %v1140, 0
    %1147 = vmatprep.subr.bf16.mxu0 0
    %1148 = vmatpush1.bf16.xpose.msra.mxu0 %v1145
    %1149 = vmatprep.subr.bf16.mxu0 0
    %1150 = vmatpush1.bf16.xpose.msra.mxu0 0
    %1151 = vmatprep.subr.bf16.mxu0 0
    %1152 = vmatpush1.bf16.xpose.msra.mxu0 0
    %1153 = vmatprep.subr.bf16.mxu0 0
    %1154 = vmatpush1.bf16.xpose.msra.mxu0 0
    %1155 = vmatprep.subr.bf16.mxu0 0
    %1156 = vmatpush1.bf16.xpose.msra.mxu0 0
    %1157 = vmatprep.subr.bf16.mxu0 0
    %1158 = vmatpush1.bf16.xpose.msra.mxu0 0
    %1159 = vmatprep.subr.bf16.mxu0 0
    %1160 = vmatpush1.bf16.xpose.msra.mxu0 0
    %1161 = vmatprep.subr.bf16.mxu0 0
    %1162 = vmatpush1.bf16.xpose.msra.mxu0 0
    %1163 = vmatprep.subr.bf16.mxu0 0
    %1164 = vmatpush1.bf16.xpose.msra.mxu0 0
    %1165 = vmatprep.subr.bf16.mxu0 0
    %1166 = vmatpush1.bf16.xpose.msra.mxu0 0
    %1167 = vmatprep.subr.bf16.mxu0 0
    %1168 = vmatpush1.bf16.xpose.msra.mxu0 0
    %1169 = vmatprep.subr.bf16.mxu0 0
    %1170 = vmatpush1.bf16.xpose.msra.mxu0 0
    %1171 = vmatprep.subr.bf16.mxu0 0
    %1172 = vmatpush1.bf16.xpose.msra.mxu0 0
    %1173 = vmatprep.subr.bf16.mxu0 0
    %1174 = vmatpush1.bf16.xpose.msra.mxu0 0
    %1175 = vmatprep.subr.bf16.mxu0 0
    %1176 = vmatpush1.bf16.xpose.msra.mxu0 0
    %1177 = vmatprep.subr.bf16.mxu0 0
    %1178 = vmatpush1.bf16.xpose.msra.mxu0 0
    %1179 = vmatprep.mubr.bf16.mxu0 0
    %1180 = vmatmul.mubr.bf16.gmra.mrb[0].mxu0 %v1142
    %v1181 = vpop.f32.mrb[0].mxu0
    %v1182 = vadd.f32 0.0, %v1181
    %v1183 = vpop.f32.mrb[0].mxu0
    %v1184 = vpop.f32.mrb[0].mxu0
    %v1185 = vpop.f32.mrb[0].mxu0
    %1186 = vdwg.mxu0
    %v1187 = vmul.f32 %v1132, 0.35355338
    %v1188 = vmul.f32 %v1182, 0.35355338
    %v1189 = vsel %vm401, %v1187, -inf
    %1190 = vmax.xlane.f32.xlu0 %v1189
    %v1191 = vpop.xlane.xlu0 %1190
    %v1192 = vsel %vm401, %v1188, -inf
    %1193 = vmax.xlane.f32.xlu0 %v1192
    %v1194 = vpop.xlane.xlu0 %1193
    %v1195 = vsub.f32 %v1187, %v1191
    %v1196 = vsub.f32 %v1188, %v1194
    %v1197 = vmul.f32 %v1195, 1.442695
    %v1198 = vpow.pop %v1197
    %v1199 = vmul.f32 %v1196, 1.442695
    %v1200 = vpow.pop %v1199
    %v1201 = vsel %vm401, %v1198, 0.0
    %1202 = vadd.xlane.f32.xlu0 %v1201
    %v1203 = vpop.xlane.xlu0 %1202
    %v1204 = vsel %vm401, %v1200, 0.0
    %1205 = vadd.xlane.f32.xlu0 %v1204
    %v1206 = vpop.xlane.xlu0 %1205
    %v1207 = vrcp.pop %v1203
    %v1208 = vrcp.pop %v1206
    %v1209 = vmul.f32 %v1198, %v1207
    %v1210 = vmul.f32 %v1200, %v1208
    %v1211 = vpack.c.bf16 %v1209, %v1209
    %v1212 = vpack.c.bf16 %v1210, %v1210
    %1213 = vrot.lane.b32.xlu0 %v399, 104
    %v1214 = vpop.permute.xlu0 %1213
    %v1216 = vsel %vm401, %v1211, 0
    %v1219 = vsel %vm523, %v1214, 0
    %1221 = vmatprep.subr.bf16.mxu0 0
    %1222 = vmatpush1.bf16.msra.mxu0 %v1219
    %1223 = vmatprep.subr.bf16.mxu0 0
    %1224 = vmatpush1.bf16.msra.mxu0 0
    %1225 = vmatprep.subr.bf16.mxu0 0
    %1226 = vmatpush1.bf16.msra.mxu0 0
    %1227 = vmatprep.subr.bf16.mxu0 0
    %1228 = vmatpush1.bf16.msra.mxu0 0
    %1229 = vmatprep.subr.bf16.mxu0 0
    %1230 = vmatpush1.bf16.msra.mxu0 0
    %1231 = vmatprep.subr.bf16.mxu0 0
    %1232 = vmatpush1.bf16.msra.mxu0 0
    %1233 = vmatprep.subr.bf16.mxu0 0
    %1234 = vmatpush1.bf16.msra.mxu0 0
    %1235 = vmatprep.subr.bf16.mxu0 0
    %1236 = vmatpush1.bf16.msra.mxu0 0
    %1237 = vmatprep.subr.bf16.mxu0 0
    %1238 = vmatpush1.bf16.msra.mxu0 0
    %1239 = vmatprep.subr.bf16.mxu0 0
    %1240 = vmatpush1.bf16.msra.mxu0 0
    %1241 = vmatprep.subr.bf16.mxu0 0
    %1242 = vmatpush1.bf16.msra.mxu0 0
    %1243 = vmatprep.subr.bf16.mxu0 0
    %1244 = vmatpush1.bf16.msra.mxu0 0
    %1245 = vmatprep.subr.bf16.mxu0 0
    %1246 = vmatpush1.bf16.msra.mxu0 0
    %1247 = vmatprep.subr.bf16.mxu0 0
    %1248 = vmatpush1.bf16.msra.mxu0 0
    %1249 = vmatprep.subr.bf16.mxu0 0
    %1250 = vmatpush1.bf16.msra.mxu0 0
    %1251 = vmatprep.subr.bf16.mxu0 0
    %1252 = vmatpush1.bf16.msra.mxu0 0
    %1253 = vmatprep.mubr.bf16.mxu0 0
    %1254 = vmatmul.mubr.bf16.gmra.mrb[0].mxu0 %v1216
    %v1255 = vpop.f32.mrb[0].mxu0
    %v1256 = vadd.f32 0.0, %v1255
    %v1257 = vpop.f32.mrb[0].mxu0
    %v1258 = vpop.f32.mrb[0].mxu0
    %v1259 = vpop.f32.mrb[0].mxu0
    %1260 = vdwg.mxu0
    %1261 = vrot.lane.b32.xlu0 %v400, 104
    %v1262 = vpop.permute.xlu0 %1261
    %v1264 = vsel %vm401, %v1212, 0
    %v1267 = vsel %vm523, %v1262, 0
    %1269 = vmatprep.subr.bf16.mxu0 0
    %1270 = vmatpush1.bf16.msra.mxu0 %v1267
    %1271 = vmatprep.subr.bf16.mxu0 0
    %1272 = vmatpush1.bf16.msra.mxu0 0
    %1273 = vmatprep.subr.bf16.mxu0 0
    %1274 = vmatpush1.bf16.msra.mxu0 0
    %1275 = vmatprep.subr.bf16.mxu0 0
    %1276 = vmatpush1.bf16.msra.mxu0 0
    %1277 = vmatprep.subr.bf16.mxu0 0
    %1278 = vmatpush1.bf16.msra.mxu0 0
    %1279 = vmatprep.subr.bf16.mxu0 0
    %1280 = vmatpush1.bf16.msra.mxu0 0
    %1281 = vmatprep.subr.bf16.mxu0 0
    %1282 = vmatpush1.bf16.msra.mxu0 0
    %1283 = vmatprep.subr.bf16.mxu0 0
    %1284 = vmatpush1.bf16.msra.mxu0 0
    %1285 = vmatprep.subr.bf16.mxu0 0
    %1286 = vmatpush1.bf16.msra.mxu0 0
    %1287 = vmatprep.subr.bf16.mxu0 0
    %1288 = vmatpush1.bf16.msra.mxu0 0
    %1289 = vmatprep.subr.bf16.mxu0 0
    %1290 = vmatpush1.bf16.msra.mxu0 0
    %1291 = vmatprep.subr.bf16.mxu0 0
    %1292 = vmatpush1.bf16.msra.mxu0 0
    %1293 = vmatprep.subr.bf16.mxu0 0
    %1294 = vmatpush1.bf16.msra.mxu0 0
    %1295 = vmatprep.subr.bf16.mxu0 0
    %1296 = vmatpush1.bf16.msra.mxu0 0
    %1297 = vmatprep.subr.bf16.mxu0 0
    %1298 = vmatpush1.bf16.msra.mxu0 0
    %1299 = vmatprep.subr.bf16.mxu0 0
    %1300 = vmatpush1.bf16.msra.mxu0 0
    %1301 = vmatprep.mubr.bf16.mxu0 0
    %1302 = vmatmul.mubr.bf16.gmra.mrb[0].mxu0 %v1264
    %v1303 = vpop.f32.mrb[0].mxu0
    %v1304 = vadd.f32 0.0, %v1303
    %v1305 = vpop.f32.mrb[0].mxu0
    %v1306 = vpop.f32.mrb[0].mxu0
    %v1307 = vpop.f32.mrb[0].mxu0
    %1308 = vdwg.mxu0
    %1311 = vrot.lane.b32.xlu0 %v1256, 24
    %v1312 = vpop.permute.xlu0 %1311
    %1313 = vrot.lane.b32.xlu0 %v1304, 24
    %v1314 = vpop.permute.xlu0 %1313
    %vm1317 = vcmask 261312
    %1318 = vst.msk [vmem:[#allocation2] sm:$0xff] %vm1317, %v1312
    %1319 = vst.msk [vmem:[#allocation2 + $0x8] sm:$0xff] %vm1317, %v1314
    %v1320 = vld [vmem:[#allocation2] sm:$0xff]
    %v1321 = vld [vmem:[#allocation2 + $0x8] sm:$0xff]
    %v1322 = vpack.c.bf16 %v1321, %v1320
    %v1323 = vld [vmem:[%s8] sm:$0xf]
    %v1324 = vld [vmem:[%s8 + $0x4] sm:$0xf]
    %v1325 = vld [vmem:[%s8 + $0x8] sm:$0xf]
    %v1326 = vld [vmem:[%s8 + $0xc] sm:$0xf]
    %v1327 = vld [vmem:[#allocation9] sm:$0x1]
    %v1329 = vlaneseq
    %v1330 = vshrl.u32 %v1329, 7
    %v1331 = vsub.s32 0, %v1330
    %v1332 = vrot.slane %v1327, %v1331
    %v1338 = vunpack.c.l.b16 %v1323
    %v1339 = vunpack.c.l.b16 %v1324
    %v1340 = vunpack.c.l.b16 %v1325
    %v1341 = vunpack.c.l.b16 %v1326
    %v1342 = vpack.c.b16 %v1339, %v1338
    %v1343 = vpack.c.b16 %v1341, %v1340
    %v1347 = vsel %vm219, %v1322, 0
    %1349 = vmatprep.subr.bf16.mxu0 0
    %1350 = vmatpush1.bf16.msra.mxu0 %v1342
    %1351 = vmatprep.subr.bf16.mxu0 0
    %1352 = vmatpush1.bf16.msra.mxu0 %v1343
    %1353 = vmatprep.subr.bf16.mxu0 0
    %1354 = vmatpush1.bf16.msra.mxu0 0
    %1355 = vmatprep.subr.bf16.mxu0 0
    %1356 = vmatpush1.bf16.msra.mxu0 0
    %1357 = vmatprep.subr.bf16.mxu0 0
    %1358 = vmatpush1.bf16.msra.mxu0 0
    %1359 = vmatprep.subr.bf16.mxu0 0
    %1360 = vmatpush1.bf16.msra.mxu0 0
    %1361 = vmatprep.subr.bf16.mxu0 0
    %1362 = vmatpush1.bf16.msra.mxu0 0
    %1363 = vmatprep.subr.bf16.mxu0 0
    %1364 = vmatpush1.bf16.msra.mxu0 0
    %1365 = vmatprep.subr.bf16.mxu0 0
    %1366 = vmatpush1.bf16.msra.mxu0 0
    %1367 = vmatprep.subr.bf16.mxu0 0
    %1368 = vmatpush1.bf16.msra.mxu0 0
    %1369 = vmatprep.subr.bf16.mxu0 0
    %1370 = vmatpush1.bf16.msra.mxu0 0
    %1371 = vmatprep.subr.bf16.mxu0 0
    %1372 = vmatpush1.bf16.msra.mxu0 0
    %1373 = vmatprep.subr.bf16.mxu0 0
    %1374 = vmatpush1.bf16.msra.mxu0 0
    %1375 = vmatprep.subr.bf16.mxu0 0
    %1376 = vmatpush1.bf16.msra.mxu0 0
    %1377 = vmatprep.subr.bf16.mxu0 0
    %1378 = vmatpush1.bf16.msra.mxu0 0
    %1379 = vmatprep.subr.bf16.mxu0 0
    %1380 = vmatpush1.bf16.msra.mxu0 0
    %1381 = vmatprep.mubr.bf16.mxu0 0
    %1382 = vmatmul.mubr.bf16.gmra.mrb[0].mxu0 %v1347
    %v1383 = vpop.f32.mrb[0].mxu0
    %v1384 = vadd.f32 %v1332, %v1383
    %v1385 = vpop.f32.mrb[0].mxu0
    %v1386 = vpop.f32.mrb[0].mxu0
    %v1387 = vadd.f32 %v1332, %v1386
    %v1388 = vpop.f32.mrb[0].mxu0
    %1389 = vdwg.mxu0
    %v1390 = vadd.f32 %v190, %v1384
    %v1391 = vadd.f32 %v191, %v1387
    %v1392 = vld [vmem:[#allocation11] sm:$0x1]
    %v1393 = vld [vmem:[#allocation12] sm:$0x1]
    %v1394 = vsel %vm219, %v1390, 0.0
    %1395 = vadd.xlane.f32.xlu0 %v1394
    %v1396 = vpop.xlane.xlu0 %1395
    %v1397 = vsel %vm219, %v1391, 0.0
    %1398 = vadd.xlane.f32.xlu0 %v1397
    %v1399 = vpop.xlane.xlu0 %1398
    %v1400 = vrcp.pop 32.0
    %v1401 = vmul.f32 %v1396, %v1400
    %v1402 = vmul.f32 %v1399, %v1400
    %v1403 = vsub.f32 %v1390, %v1401
    %v1404 = vsub.f32 %v1391, %v1402
    %v1405 = vmul.f32 %v1403, %v1403
    %v1406 = vmul.f32 %v1404, %v1404
    %v1407 = vsel %vm219, %v1405, 0.0
    %1408 = vadd.xlane.f32.xlu0 %v1407
    %v1409 = vpop.xlane.xlu0 %1408
    %v1410 = vsel %vm219, %v1406, 0.0
    %1411 = vadd.xlane.f32.xlu0 %v1410
    %v1412 = vpop.xlane.xlu0 %1411
    %v1413 = vmul.f32 %v1409, %v1400
    %v1414 = vmul.f32 %v1412, %v1400
    %v1415 = vadd.f32 %v1413, 1e-05
    %v1416 = vadd.f32 %v1414, 1e-05
    %v1417 = vrsqrt.pop %v1415
    %v1418 = vrsqrt.pop %v1416
    %v1419 = vmul.f32 %v1403, %v1417
    %v1420 = vmul.f32 %v1404, %v1418
    %v1422 = vlaneseq
    %v1423 = vshrl.u32 %v1422, 7
    %v1424 = vsub.s32 0, %v1423
    %v1425 = vrot.slane %v1392, %v1424
    %v1427 = vmul.f32 %v1419, %v1425
    %v1428 = vmul.f32 %v1420, %v1425
    %v1430 = vlaneseq
    %v1431 = vshrl.u32 %v1430, 7
    %v1432 = vsub.s32 0, %v1431
    %v1433 = vrot.slane %v1393, %v1432
    %v1435 = vadd.f32 %v1427, %v1433
    %v1436 = vadd.f32 %v1428, %v1433
    %v1437 = vpack.c.bf16 %v1436, %v1435
    %v1438 = vld [vmem:[#allocation14] sm:$0xf]
    %v1439 = vld [vmem:[#allocation14 + $0x4] sm:$0xf]
    %v1440 = vld [vmem:[#allocation14 + $0x8] sm:$0xf]
    %v1441 = vld [vmem:[#allocation14 + $0xc] sm:$0xf]
    %v1442 = vld [vmem:[#allocation15] sm:$0x1]
    %v1444 = vlaneseq
    %v1445 = vshrl.u32 %v1444, 7
    %v1446 = vsub.s32 0, %v1445
    %v1447 = vrot.slane %v1442, %v1446
    %v1453 = vunpack.c.l.b16 %v1438
    %v1454 = vunpack.c.l.b16 %v1439
    %v1455 = vunpack.c.l.b16 %v1440
    %v1456 = vunpack.c.l.b16 %v1441
    %v1457 = vpack.c.b16 %v1454, %v1453
    %v1458 = vpack.c.b16 %v1456, %v1455
    %v1462 = vsel %vm219, %v1437, 0
    %1464 = vmatprep.subr.bf16.mxu0 0
    %1465 = vmatpush1.bf16.msra.mxu0 %v1457
    %1466 = vmatprep.subr.bf16.mxu0 0
    %1467 = vmatpush1.bf16.msra.mxu0 %v1458
    %1468 = vmatprep.subr.bf16.mxu0 0
    %1469 = vmatpush1.bf16.msra.mxu0 0
    %1470 = vmatprep.subr.bf16.mxu0 0
    %1471 = vmatpush1.bf16.msra.mxu0 0
    %1472 = vmatprep.subr.bf16.mxu0 0
    %1473 = vmatpush1.bf16.msra.mxu0 0
    %1474 = vmatprep.subr.bf16.mxu0 0
    %1475 = vmatpush1.bf16.msra.mxu0 0
    %1476 = vmatprep.subr.bf16.mxu0 0
    %1477 = vmatpush1.bf16.msra.mxu0 0
    %1478 = vmatprep.subr.bf16.mxu0 0
    %1479 = vmatpush1.bf16.msra.mxu0 0
    %1480 = vmatprep.subr.bf16.mxu0 0
    %1481 = vmatpush1.bf16.msra.mxu0 0
    %1482 = vmatprep.subr.bf16.mxu0 0
    %1483 = vmatpush1.bf16.msra.mxu0 0
    %1484 = vmatprep.subr.bf16.mxu0 0
    %1485 = vmatpush1.bf16.msra.mxu0 0
    %1486 = vmatprep.subr.bf16.mxu0 0
    %1487 = vmatpush1.bf16.msra.mxu0 0
    %1488 = vmatprep.subr.bf16.mxu0 0
    %1489 = vmatpush1.bf16.msra.mxu0 0
    %1490 = vmatprep.subr.bf16.mxu0 0
    %1491 = vmatpush1.bf16.msra.mxu0 0
    %1492 = vmatprep.subr.bf16.mxu0 0
    %1493 = vmatpush1.bf16.msra.mxu0 0
    %1494 = vmatprep.subr.bf16.mxu0 0
    %1495 = vmatpush1.bf16.msra.mxu0 0
    %1496 = vmatprep.mubr.bf16.mxu0 0
    %1497 = vmatmul.mubr.bf16.gmra.mrb[0].mxu0 %v1462
    %v1498 = vpop.f32.mrb[0].mxu0
    %v1499 = vadd.f32 %v1447, %v1498
    %v1500 = vpop.f32.mrb[0].mxu0
    %v1501 = vpop.f32.mrb[0].mxu0
    %v1502 = vadd.f32 %v1447, %v1501
    %v1503 = vpop.f32.mrb[0].mxu0
    %1504 = vdwg.mxu0
    %v1505 = vmax.f32 %v1499, 0.0
    %v1506 = vmax.f32 %v1502, 0.0
    %v1507 = vpack.c.bf16 %v1506, %v1505
    %v1508 = vld [vmem:[%s14] sm:$0xf]
    %v1509 = vld [vmem:[%s14 + $0x4] sm:$0xf]
    %v1510 = vld [vmem:[%s14 + $0x8] sm:$0xf]
    %v1511 = vld [vmem:[%s14 + $0xc] sm:$0xf]
    %v1512 = vld [vmem:[%s14 + $0x10] sm:$0xf]
    %v1513 = vld [vmem:[%s14 + $0x14] sm:$0xf]
    %v1514 = vld [vmem:[%s14 + $0x18] sm:$0xf]
    %v1515 = vld [vmem:[%s14 + $0x1c] sm:$0xf]
    %v1516 = vld [vmem:[#allocation17] sm:$0x1]
    %v1518 = vlaneseq
    %v1519 = vshrl.u32 %v1518, 7
    %v1520 = vsub.s32 0, %v1519
    %v1521 = vrot.slane %v1516, %v1520
    %v1531 = vunpack.c.l.b16 %v1508
    %v1532 = vunpack.c.l.b16 %v1509
    %v1533 = vunpack.c.l.b16 %v1510
    %v1534 = vunpack.c.l.b16 %v1511
    %v1535 = vunpack.c.l.b16 %v1512
    %v1536 = vunpack.c.l.b16 %v1513
    %v1537 = vunpack.c.l.b16 %v1514
    %v1538 = vunpack.c.l.b16 %v1515
    %v1539 = vpack.c.b16 %v1532, %v1531
    %v1540 = vpack.c.b16 %v1534, %v1533
    %v1541 = vpack.c.b16 %v1536, %v1535
    %v1542 = vpack.c.b16 %v1538, %v1537
    %vm1547 = vcmask 523264
    %v1549 = vsel %vm1547, %v1507, 0
    %1551 = vmatprep.subr.bf16.mxu0 0
    %1552 = vmatpush1.bf16.msra.mxu0 %v1539
    %1553 = vmatprep.subr.bf16.mxu0 0
    %1554 = vmatpush1.bf16.msra.mxu0 %v1540
    %1555 = vmatprep.subr.bf16.mxu0 0
    %1556 = vmatpush1.bf16.msra.mxu0 %v1541
    %1557 = vmatprep.subr.bf16.mxu0 0
    %1558 = vmatpush1.bf16.msra.mxu0 %v1542
    %1559 = vmatprep.subr.bf16.mxu0 0
    %1560 = vmatpush1.bf16.msra.mxu0 0
    %1561 = vmatprep.subr.bf16.mxu0 0
    %1562 = vmatpush1.bf16.msra.mxu0 0
    %1563 = vmatprep.subr.bf16.mxu0 0
    %1564 = vmatpush1.bf16.msra.mxu0 0
    %1565 = vmatprep.subr.bf16.mxu0 0
    %1566 = vmatpush1.bf16.msra.mxu0 0
    %1567 = vmatprep.subr.bf16.mxu0 0
    %1568 = vmatpush1.bf16.msra.mxu0 0
    %1569 = vmatprep.subr.bf16.mxu0 0
    %1570 = vmatpush1.bf16.msra.mxu0 0
    %1571 = vmatprep.subr.bf16.mxu0 0
    %1572 = vmatpush1.bf16.msra.mxu0 0
    %1573 = vmatprep.subr.bf16.mxu0 0
    %1574 = vmatpush1.bf16.msra.mxu0 0
    %1575 = vmatprep.subr.bf16.mxu0 0
    %1576 = vmatpush1.bf16.msra.mxu0 0
    %1577 = vmatprep.subr.bf16.mxu0 0
    %1578 = vmatpush1.bf16.msra.mxu0 0
    %1579 = vmatprep.subr.bf16.mxu0 0
    %1580 = vmatpush1.bf16.msra.mxu0 0
    %1581 = vmatprep.subr.bf16.mxu0 0
    %1582 = vmatpush1.bf16.msra.mxu0 0
    %1583 = vmatprep.mubr.bf16.mxu0 0
    %1584 = vmatmul.mubr.bf16.gmra.mrb[0].mxu0 %v1549
    %v1585 = vpop.f32.mrb[0].mxu0
    %v1586 = vadd.f32 %v1521, %v1585
    %v1587 = vpop.f32.mrb[0].mxu0
    %v1588 = vpop.f32.mrb[0].mxu0
    %v1589 = vadd.f32 %v1521, %v1588
    %v1590 = vpop.f32.mrb[0].mxu0
    %1591 = vdwg.mxu0
    %v1592 = vadd.f32 %v1435, %v1586
    %v1593 = vadd.f32 %v1436, %v1589
    %v1594 = vld [vmem:[#allocation18] sm:$0x1]
    %v1595 = vld [vmem:[#allocation20] sm:$0x1]
    %v1596 = vsel %vm219, %v1592, 0.0
    %1597 = vadd.xlane.f32.xlu0 %v1596
    %v1598 = vpop.xlane.xlu0 %1597
    %v1599 = vsel %vm219, %v1593, 0.0
    %1600 = vadd.xlane.f32.xlu0 %v1599
    %v1601 = vpop.xlane.xlu0 %1600
    %v1602 = vmul.f32 %v1598, %v1400
    %v1603 = vmul.f32 %v1601, %v1400
    %v1604 = vsub.f32 %v1592, %v1602
    %v1605 = vsub.f32 %v1593, %v1603
    %v1606 = vmul.f32 %v1604, %v1604
    %v1607 = vmul.f32 %v1605, %v1605
    %v1608 = vsel %vm219, %v1606, 0.0
    %1609 = vadd.xlane.f32.xlu0 %v1608
    %v1610 = vpop.xlane.xlu0 %1609
    %v1611 = vsel %vm219, %v1607, 0.0
    %1612 = vadd.xlane.f32.xlu0 %v1611
    %v1613 = vpop.xlane.xlu0 %1612
    %v1614 = vmul.f32 %v1610, %v1400
    %v1615 = vmul.f32 %v1613, %v1400
    %v1616 = vadd.f32 %v1614, 1e-05
    %v1617 = vadd.f32 %v1615, 1e-05
    %v1618 = vrsqrt.pop %v1616
    %v1619 = vrsqrt.pop %v1617
    %v1620 = vmul.f32 %v1604, %v1618
    %v1621 = vmul.f32 %v1605, %v1619
    %v1623 = vlaneseq
    %v1624 = vshrl.u32 %v1623, 7
    %v1625 = vsub.s32 0, %v1624
    %v1626 = vrot.slane %v1594, %v1625
    %v1628 = vmul.f32 %v1620, %v1626
    %v1629 = vmul.f32 %v1621, %v1626
    %v1631 = vlaneseq
    %v1632 = vshrl.u32 %v1631, 7
    %v1633 = vsub.s32 0, %v1632
    %v1634 = vrot.slane %v1595, %v1633
    %v1636 = vadd.f32 %v1628, %v1634
    %v1637 = vadd.f32 %v1629, %v1634
    %1638 = vst.msk [vmem:[#allocation21] sm:$0xff] %vm219, %v1636
    %1639 = vst.msk [vmem:[#allocation21 + $0x8] sm:$0xff] %vm219, %v1637
    // Predicated region
    $region118: #{rel_transformer_decoder_layer.1} parent=1 // pred_check
      _
    $region119: #{rel_transformer_decoder_layer.1} parent=1 // pred_check_branch
      %1641 = sbr.rel (0) target = $region121
    $region120: #{rel_transformer_decoder_layer.1} parent=1 // pred_region
      %s1643 = ssub.s32 256, 256
      %1644 = vsyncadd [#allocation5], %s1643
      %s1645 = sshll.u32 [#allocation21], 4
      %s1646 = int_to_ptr.vmem [resolvable:$true] %s1645
      %1651 = dma.vmem_to_hbm [thread:$0]  %s1646, 256, %s18, [#allocation5], 128, 128, 8
    $region121: #{rel_transformer_decoder_layer.1} parent=1 // pred_fallthru
      _
    // Predicated region
    $region122: #{rel_transformer_decoder_layer.1} parent=1 // pred_check
      _
    $region123: #{rel_transformer_decoder_layer.1} parent=1 // pred_check_branch
      %1653 = sbr.rel (0) target = $region125
    $region124: #{rel_transformer_decoder_layer.1} parent=1 // pred_region
      %1654 = dma.done [#allocation5], 256
    $region125: #{rel_transformer_decoder_layer.1} parent=1 // pred_fallthru
      _
    %1655 = vsyncpa [#allocation4], 1
    %1656 = vsyncpa [#allocation7], 1
    %1657 = vsyncpa [#allocation10], 1
    %1658 = vsyncpa [#allocation13], 1
    %1659 = vsyncpa [#allocation16], 1
    %1660 = vsyncpa [#allocation19], 1
    %1661 = vsyncpa [#allocation5], 1

</llo_original>
